<compile_context>
chip_gen: v6e
topology: v6e:2x2x1
jax: 0.10.0
libtpu: 0.0.40
codegen_flags: <defaults>
</compile_context>

<pallas_src>
import functools
import numpy as np

import jax
import jax.numpy as jnp
from jax import lax
from jax.experimental import pallas as pl
from jax.experimental.pallas import tpu as pltpu

_INV_SQRT2 = 0.7071067811865476


# ----------------------------------------------------------------------------
# tiling helpers
# ----------------------------------------------------------------------------
def _pick_row_tile(m, cap=256, min_steps=2):
    """Largest row tile <= cap that divides m and is a multiple of 8 (or m itself),
    preferring >= min_steps grid steps.  cap=256 keeps blocks v7x(64 MiB VMEM)-safe."""
    divs = [t for t in range(1, m + 1)
            if m % t == 0 and (t % 8 == 0 or t == m) and t <= cap]
    if not divs:
        return m
    pref = [t for t in divs if m // t >= min_steps]
    return max(pref) if pref else max(divs)


def _pick_col_tile(n):
    """Lane-dense output column tile (multiple of 128) when N is large."""
    for t in (512, 384, 256, 128):
        if n % t == 0:
            return t
    return n


def _pick_query_rows(H, W, k, d, target=128):
    """Rows per query tile: divides H, Tq = Tr*W a multiple of 8, Tq <= target.
    For dilation > 1 prefer the Tr minimizing the key row-band (masked-key waste)."""
    cands = [tr for tr in range(1, H + 1)
             if H % tr == 0 and (tr * W) % 8 == 0 and tr * W <= max(target, W)]
    if not cands:
        return H
    if d > 1:
        big = [tr for tr in cands if tr * W >= 64] or cands
        return min(big, key=lambda tr: (min(tr + (k - 1) * d, H), -tr))
    return max(cands)


def _vmem_limit(est_bytes):
    # explicit scoped-VMEM request: enough for the blocks + headroom, but <= v7x physical.
    return int(min(max(est_bytes + (8 << 20), 16 << 20), 48 << 20))


# ----------------------------------------------------------------------------
# fused linear kernel: [LayerNorm] -> bf16 matmul(s) + bias -> [GELU] -> [+residual]
# ----------------------------------------------------------------------------
def _fused_linear_kernel(*refs, n_out, has_ln, has_res, activation, eps):
    it = iter(refs)
    x_ref = next(it)
    wb_refs = [(next(it), next(it)) for _ in range(n_out)]
    g_ref = next(it) if has_ln else None
    be_ref = next(it) if has_ln else None
    r_ref = next(it) if has_res else None
    o_refs = [next(it) for _ in range(n_out)]

    if has_ln:
        x = x_ref[...].astype(jnp.float32)
        mu = jnp.mean(x, axis=-1, keepdims=True)
        xc = x - mu
        var = jnp.mean(xc * xc, axis=-1, keepdims=True)
        x = (xc * lax.rsqrt(var + eps)) * g_ref[...] + be_ref[...]
        xb = x.astype(jnp.bfloat16)
    else:
        xb = x_ref[...].astype(jnp.bfloat16)

    for (w_ref, b_ref), o_ref in zip(wb_refs, o_refs):
        # bf16 MXU matmul with f32 accumulation
        acc = jnp.dot(xb, w_ref[...], preferred_element_type=jnp.float32) + b_ref[...]
        if activation == "gelu":
            acc = 0.5 * acc * (1.0 + lax.erf(acc * _INV_SQRT2))   # exact erf GELU
        if has_res:
            acc = acc + r_ref[...].astype(jnp.float32)
        o_ref[...] = acc.astype(o_ref.dtype)


def fused_linear(x, w, b, *, gamma=None, beta=None, residual=None,
                 activation=None, out_dtype=None, eps=1e-5):
    """x: (M, K); w: (K, N) (torch Linear weight transposed) or a list of such
    (column-split outputs, e.g. q / kv); b: (N,) or a matching list."""
    multi = isinstance(w, (list, tuple))
    ws = list(w) if multi else [w]
    bs = list(b) if multi else [b]
    n_out = len(ws)
    M, K = x.shape
    Ns = [int(wi.shape[1]) for wi in ws]
    has_ln = gamma is not None
    has_res = residual is not None
    assert not (multi and (has_res or activation is not None))
    out_dtype = out_dtype or x.dtype
    out_isz = jnp.dtype(out_dtype).itemsize

    TM = _pick_row_tile(M)
    gm = M // TM
    TN = _pick_col_tile(Ns[0]) if (n_out == 1 and Ns[0] > 512) else None
    gn = Ns[0] // TN if TN else 1

    args = [x]
    in_specs = [pl.BlockSpec((TM, K), lambda j, i: (i, 0))]
    est = TM * K * x.dtype.itemsize
    for wi, bi, Ni in zip(ws, bs, Ns):
        tn = TN if TN else Ni
        # weight/bias block index is constant over the inner (row) grid axis -> stays
        # resident in VMEM instead of being re-streamed M//TM times from HBM.
        in_specs += [pl.BlockSpec((K, tn), lambda j, i: (0, j)),
                     pl.BlockSpec((1, tn), lambda j, i: (0, j))]
        args += [wi.astype(jnp.bfloat16), bi.reshape(1, Ni).astype(jnp.float32)]
        est += K * tn * 2 + tn * 4 + TM * tn * out_isz
    if has_ln:
        in_specs += [pl.BlockSpec((1, K), lambda j, i: (0, 0)),
                     pl.BlockSpec((1, K), lambda j, i: (0, 0))]
        args += [gamma.reshape(1, K).astype(jnp.float32),
                 beta.reshape(1, K).astype(jnp.float32)]
        est += 2 * K * 4
    if has_res:
        tn = TN if TN else Ns[0]
        # fixed: residual block is (TM, TN) with an (i, j) index map
        in_specs += [pl.BlockSpec((TM, tn), lambda j, i: (i, j))]
        args += [residual]
        est += TM * tn * residual.dtype.itemsize

    out_shapes = [jax.ShapeDtypeStruct((M, Ni), out_dtype) for Ni in Ns]
    out_specs = [pl.BlockSpec((TM, TN if TN else Ni), lambda j, i: (i, j)) for Ni in Ns]

    kernel = functools.partial(_fused_linear_kernel, n_out=n_out, has_ln=has_ln,
                               has_res=has_res, activation=activation, eps=eps)
    return pl.pallas_call(
        kernel,
        out_shape=tuple(out_shapes) if multi else out_shapes[0],
        grid=(gn, gm),
        in_specs=in_specs,
        out_specs=tuple(out_specs) if multi else out_specs[0],
        compiler_params=pltpu.CompilerParams(
            dimension_semantics=("parallel", "parallel"),
            vmem_limit_bytes=_vmem_limit(2 * est)),
    )(*args)


# ----------------------------------------------------------------------------
# NATTEN neighborhood / relative-position-bias index functions
# ----------------------------------------------------------------------------
def _window_start(i, L, k, ns, d):
    if d <= 1:
        start = max(i - ns, 0)
        if i + ns >= L:
            start += L - i - ns - 1
        return start
    ni = i - ns * d
    if ni < 0:
        return i % d
    if i + ns * d >= L:
        imodd = i % d
        a = (L // d) * d
        b = L - a
        if imodd < b:
            return L - b + imodd - 2 * ns * d
        return a + imodd - k * d
    return ni


def _pb_start(i, L, k, ns, d):
    if d <= 1:
        pi = ns
        if i < ns:
            pi += ns - i
        if i + ns >= L:
            pi += L - i - 1 - ns
        return pi
    if i - ns * d < 0:
        return k - 1 - (i // d)
    if i + ns * d >= L:
        return (L - i - 1) // d
    return ns


def _nbr_indices(H, W, k, d):
    """Gather tables for the pure-JAX reference: (L, K2) neighbor token ids + rpb ids."""
    ns = k // 2
    wi = [_window_start(i, H, k, ns, d) for i in range(H)]
    pi = [_pb_start(i, H, k, ns, d) for i in range(H)]
    wj = [_window_start(j, W, k, ns, d) for j in range(W)]
    pj = [_pb_start(j, W, k, ns, d) for j in range(W)]
    K2 = k * k
    nbr = np.zeros((H * W, K2), np.int32)
    bia = np.zeros((H * W, K2), np.int32)
    for i in range(H):
        for j in range(W):
            q = i * W + j
            for ki in range(k):
                for kj in range(k):
                    nbr[q, ki * k + kj] = (wi[i] + ki * d) * W + (wj[j] + kj * d)
                    bia[q, ki * k + kj] = (pi[i] + ki) * (2 * k - 1) + (pj[j] + kj)
    return jnp.asarray(nbr), jnp.asarray(bia)


@functools.lru_cache(maxsize=None)
def _build_band_tables(H, W, k, d, Tr):
    """Tiled-NA tables: per query row-tile, the key row-band start and an rpb-index table
    over the band (value -1 => masked)."""
    ns = k // 2
    wi = [_window_start(i, H, k, ns, d) for i in range(H)]
    pi = [_pb_start(i, H, k, ns, d) for i in range(H)]
    wj = [_window_start(j, W, k, ns, d) for j in range(W)]
    pj = [_pb_start(j, W, k, ns, d) for j in range(W)]
    T = H // Tr
    los, his = [], []
    for t in range(T):
        rows = range(t * Tr, (t + 1) * Tr)
        los.append(min(wi[i] for i in rows))
        his.append(max(wi[i] for i in rows) + (k - 1) * d)
    Rb = min(max(hi - lo + 1 for lo, hi in zip(los, his)), H)
    band_start = np.array([min(max(lo, 0), H - Rb) for lo in los], np.int32)

    Tq, Kt, R = Tr * W, Rb * W, 2 * k - 1
    idx = np.full((T, Tq, Kt), -1, np.int32)
    for t in range(T):
        bs = int(band_start[t])
        for ii in range(Tr):
            i = t * Tr + ii
            for j in range(W):
                ql = ii * W + j
                for ki in range(k):
                    key_i = wi[i] + ki * d
                    for kj in range(k):
                        key_j = wj[j] + kj * d
                        kl = (key_i - bs) * W + key_j
                        idx[t, ql, kl] = (pi[i] + ki) * R + (pj[j] + kj)
    return band_start, Rb, idx


def _band_bias(rpb, idx_np):
    """(T, heads, Tq, Kt) additive bias in bf16: rpb value inside the neighborhood, -1e9 outside."""
    num_heads = rpb.shape[0]
    rpb_flat = rpb.reshape(num_heads, -1).astype(jnp.float32)
    T, Tq, Kt = idx_np.shape
    safe = jnp.asarray(np.maximum(idx_np, 0).reshape(-1))
    gathered = jnp.take(rpb_flat, safe, axis=1).reshape(num_heads, T, Tq, Kt)
    mask = jnp.asarray(idx_np >= 0)[None]
    bias = jnp.where(mask, gathered, jnp.float32(-1e9))
    return jnp.transpose(bias, (1, 0, 2, 3)).astype(jnp.bfloat16)


# ----------------------------------------------------------------------------
# tiled neighborhood-attention kernel (row-band formulation, double-buffered K/V DMA)
# ----------------------------------------------------------------------------
def _na_band_kernel(band_ref, q_ref, kv_hbm, bias_ref, o_ref, kv_buf, sem,
                    *, num_heads, head_dim, W):
    t = pl.program_id(0)
    b = pl.program_id(1)
    nb = pl.num_programs(1)
    Kt = kv_buf.shape[1]
    C = num_heads * head_dim
    row0 = band_ref[t] * W
    slot = b % 2

    def band_copy(bb, sl):
        # one DMA for the fused K|V band of batch bb (kv HBM layout: (B, L, 2C))
        return pltpu.make_async_copy(kv_hbm.at[bb, pl.ds(row0, Kt)],
                                     kv_buf.at[sl], sem.at[sl])

    # first batch of this query tile: nothing prefetched it yet
    @pl.when(b == 0)
    def _():
        band_copy(b, slot).start()

    band_copy(b, slot).wait()

    # double-buffering: prefetch the next batch's band (same rows) into the other slot
    # so its HBM->VMEM transfer overlaps this step's compute
    @pl.when(b + 1 < nb)
    def _():
        band_copy(b + 1, 1 - slot).start()

    q = q_ref[0]                                   # (Tq, C) bf16, q-scale already folded in
    kv = kv_buf[slot]                              # (Kt, 2C) bf16
    k = kv[:, :C]
    v = kv[:, C:]

    Tq = q.shape[0]
    # batched per-head MXU matmuls (heads leading): (h, Tq, hd) x (h, Kt, hd)
    q3 = jnp.swapaxes(q.reshape(Tq, num_heads, head_dim), 0, 1)
    k3 = jnp.swapaxes(k.reshape(Kt, num_heads, head_dim), 0, 1)
    v3 = jnp.swapaxes(v.reshape(Kt, num_heads, head_dim), 0, 1)

    logits = jnp.einsum('hqd,hkd->hqk', q3, k3,
                        preferred_element_type=jnp.float32)
    logits = logits + bias_ref[0].astype(jnp.float32)     # rpb or -1e9 mask, f32
    m = jnp.max(logits, axis=-1, keepdims=True)
    p = jnp.exp(logits - m)
    denom = jnp.sum(p, axis=-1, keepdims=True)
    out = jnp.einsum('hqk,hkd->hqd', p.astype(jnp.bfloat16), v3,
                     preferred_element_type=jnp.float32)
    out = out * pl.reciprocal(denom, approx=True)          # normalize after p.v (cheaper)
    out = jnp.swapaxes(out, 0, 1).reshape(Tq, C)           # lane-dense (Tq, C)
    o_ref[0] = out.astype(o_ref.dtype)


def neighborhood_attention_tiled(q, kv, bias, band_start, B, H, W, C, num_heads, Tr, Rb):
    L = H * W
    Tq, Kt, T = Tr * W, Rb * W, H // Tr
    head_dim = C // num_heads

    kernel = functools.partial(_na_band_kernel, num_heads=num_heads,
                               head_dim=head_dim, W=W)
    est = (2 * Tq * C * q.dtype.itemsize
           + 2 * num_heads * Tq * Kt * bias.dtype.itemsize
           + 2 * Tq * C * 2
           + 2 * Kt * 2 * C * kv.dtype.itemsize)
    grid_spec = pltpu.PrefetchScalarGridSpec(
        num_scalar_prefetch=1,
        grid=(T, B),                                        # batch innermost: bias stays resident
        in_specs=[
            pl.BlockSpec((1, Tq, C), lambda t, b, bs: (b, t, 0)),               # q tile
            pl.BlockSpec(memory_space=pl.ANY),                                   # fused K|V (band DMA)
            pl.BlockSpec((1, num_heads, Tq, Kt), lambda t, b, bs: (t, 0, 0, 0)), # bias (t only)
        ],
        out_specs=pl.BlockSpec((1, Tq, C), lambda t, b, bs: (b, t, 0)),
        scratch_shapes=[
            pltpu.VMEM((2, Kt, 2 * C), kv.dtype),            # double-buffered K|V band
            pltpu.SemaphoreType.DMA((2,)),
        ],
    )
    return pl.pallas_call(
        kernel,
        out_shape=jax.ShapeDtypeStruct((B, L, C), jnp.bfloat16),
        grid_spec=grid_spec,
        compiler_params=pltpu.CompilerParams(
            dimension_semantics=("parallel", "arbitrary"),
            vmem_limit_bytes=_vmem_limit(est)),
    )(band_start, q, kv, bias)


# ----------------------------------------------------------------------------
# NATLayer forward (drop/drop_path are identity at p=0; layer_scale=None path)
# ----------------------------------------------------------------------------
def nat_layer(x, p, num_heads, kernel_size, dilation):
    B, H, W, C = x.shape
    d = 1 if dilation is None else int(dilation)
    # TODO(synk): NATTEN pads feature maps smaller than kernel_size*dilation; not replicated here.
    assert H >= kernel_size * d and W >= kernel_size * d
    assert C % num_heads == 0 and kernel_size % 2 == 1
    L = H * W
    hd = C // num_heads
    scale = hd ** -0.5
    x2d = x.reshape(B * L, C)

    # norm1 fused into the qkv projection; q-scale folded into the q weights;
    # outputs: q (M, C) and fused kv (M, 2C), both bf16 (halves attention-side DMA).
    wq = p["qkv_w"][:, :C] * scale
    bq = p["qkv_b"][:C] * scale
    wkv = p["qkv_w"][:, C:]
    bkv = p["qkv_b"][C:]
    q2d, kv2d = fused_linear(x2d, [wq, wkv], [bq, bkv],
                             gamma=p["norm1_g"], beta=p["norm1_b"],
                             out_dtype=jnp.bfloat16)
    q3 = q2d.reshape(B, L, C)
    kv3 = kv2d.reshape(B, L, 2 * C)

    Tr = _pick_query_rows(H, W, kernel_size, d)
    band_start_np, Rb, idx = _build_band_tables(H, W, kernel_size, d, Tr)
    bias = _band_bias(p["rpb"], idx)                  # (T, heads, Tq, Kt) bf16
    band_start = jnp.asarray(band_start_np)

    attn = neighborhood_attention_tiled(q3, kv3, bias, band_start, B, H, W, C,
                                        num_heads, Tr, Rb)

    # proj with the NATLayer shortcut fused into its epilogue
    x1 = fused_linear(attn.reshape(B * L, C), p["proj_w"], p["proj_b"],
                      residual=x2d, out_dtype=x.dtype)
    # norm2 + GELU fused into fc1 (bf16 intermediate); second residual fused into fc2
    h = fused_linear(x1, p["fc1_w"], p["fc1_b"],
                     gamma=p["norm2_g"], beta=p["norm2_b"], activation="gelu",
                     out_dtype=jnp.bfloat16)
    out = fused_linear(h, p["fc2_w"], p["fc2_b"], residual=x1, out_dtype=x.dtype)
    return out.reshape(B, H, W, C)


# ----------------------------------------------------------------------------
# pure-JAX reference (gather-based NATTEN semantics) for validation
# ----------------------------------------------------------------------------
def nat_layer_reference(x, p, num_heads, kernel_size, dilation, eps=1e-5):
    B, H, W, C = x.shape
    d = 1 if dilation is None else int(dilation)
    L = H * W
    hd = C // num_heads
    scale = hd ** -0.5
    K2 = kernel_size * kernel_size

    def ln(v, g, b):
        mu = v.mean(-1, keepdims=True)
        var = ((v - mu) ** 2).mean(-1, keepdims=True)
        return (v - mu) / jnp.sqrt(var + eps) * g + b

    x2 = x.reshape(B, L, C)
    y = ln(x2, p["norm1_g"], p["norm1_b"])
    qkv = (y @ p["qkv_w"] + p["qkv_b"]).reshape(B, L, 3, num_heads, hd)
    q = jnp.transpose(qkv[:, :, 0], (0, 2, 1, 3)) * scale
    k = jnp.transpose(qkv[:, :, 1], (0, 2, 1, 3))
    v = jnp.transpose(qkv[:, :, 2], (0, 2, 1, 3))

    nbr_idx, bias_idx = _nbr_indices(H, W, kernel_size, d)
    k_nb = jnp.take(k, nbr_idx.reshape(-1), axis=2).reshape(B, num_heads, L, K2, hd)
    v_nb = jnp.take(v, nbr_idx.reshape(-1), axis=2).reshape(B, num_heads, L, K2, hd)
    rpb_flat = p["rpb"].reshape(num_heads, -1)
    bias = jnp.take(rpb_flat, bias_idx.reshape(-1), axis=1).reshape(num_heads, L, K2)

    logits = jnp.einsum('bhld,bhlkd->bhlk', q, k_nb) + bias[None]
    attn = jax.nn.softmax(logits, axis=-1)
    out = jnp.einsum('bhlk,bhlkd->bhld', attn, v_nb)
    out = jnp.transpose(out, (0, 2, 1, 3)).reshape(B, L, C)
    out = out @ p["proj_w"] + p["proj_b"]
    x1 = x2 + out

    z = ln(x1, p["norm2_g"], p["norm2_b"])
    h1 = z @ p["fc1_w"] + p["fc1_b"]
    h1 = 0.5 * h1 * (1.0 + lax.erf(h1 / np.sqrt(2.0)))
    h2 = h1 @ p["fc2_w"] + p["fc2_b"]
    return (x1 + h2).reshape(B, H, W, C)


# ----------------------------------------------------------------------------
# parameter init (shapes follow the PyTorch module; Linear weights stored transposed)
# ----------------------------------------------------------------------------
def init_nat_layer_params(key, dim, num_heads, kernel_size, mlp_ratio):
    ks = jax.random.split(key, 13)
    hidden = int(dim * mlp_ratio)
    r = 2 * kernel_size - 1
    f32 = jnp.float32

    def nrm(k, shape, s=0.02):
        return s * jax.random.normal(k, shape, f32)

    return {
        "norm1_g": 1.0 + nrm(ks[0], (dim,), 0.05),
        "norm1_b": nrm(ks[1], (dim,), 0.05),
        "qkv_w": nrm(ks[2], (dim, 3 * dim)),
        "qkv_b": nrm(ks[3], (3 * dim,)),
        "rpb": nrm(ks[4], (num_heads, r, r), 0.1),
        "proj_w": nrm(ks[5], (dim, dim)),
        "proj_b": nrm(ks[6], (dim,)),
        "norm2_g": 1.0 + nrm(ks[7], (dim,), 0.05),
        "norm2_b": nrm(ks[8], (dim,), 0.05),
        "fc1_w": nrm(ks[9], (dim, hidden)),
        "fc1_b": nrm(ks[10], (hidden,)),
        "fc2_w": nrm(ks[11], (hidden, dim)),
        "fc2_b": nrm(ks[12], (dim,)),
    }


# ----------------------------------------------------------------------------
# main
# ----------------------------------------------------------------------------
if __name__ == "__main__":
    B, H, W, dim = 2, 16, 16, 64
    num_heads = 4
    kernel_size = 7
    mlp_ratio = 4.0
    dilations = (1, 2)          # two stacked NATLayers, as used in DiNAT stages

    key = jax.random.PRNGKey(0)
    kx, kp = jax.random.split(key)
    x = jax.random.normal(kx, (B, H, W, dim), jnp.float32)

    layer_keys = jax.random.split(kp, len(dilations))
    layer_params = [init_nat_layer_params(k, dim, num_heads, kernel_size, mlp_ratio)
                    for k in layer_keys]

    y = x
    for p, dil in zip(layer_params, dilations):
        y = nat_layer(y, p, num_heads, kernel_size, dil)
    y = jax.block_until_ready(y)

    # correctness check against a pure-JAX gather-based f32 reference
    yr = x
    for p, dil in zip(layer_params, dilations):
        yr = nat_layer_reference(yr, p, num_heads, kernel_size, dil)
    yr = jax.block_until_ready(yr)
    np.testing.assert_allclose(np.asarray(y), np.asarray(yr), rtol=2e-2, atol=2e-2)

    print("KERNEL_OK")
</pallas_src>

<mosaic_0001>
module attributes {stable_mosaic.version = 11 : i64} {
  func.func @_fused_linear_kernel(%arg0: i32, %arg1: i32, %arg2: memref<256x64xf32, #tpu.memory_space<vmem>>, %arg3: memref<64x64xbf16, #tpu.memory_space<vmem>>, %arg4: memref<1x64xf32, #tpu.memory_space<vmem>>, %arg5: memref<64x128xbf16, #tpu.memory_space<vmem>>, %arg6: memref<1x128xf32, #tpu.memory_space<vmem>>, %arg7: memref<1x64xf32, #tpu.memory_space<vmem>>, %arg8: memref<1x64xf32, #tpu.memory_space<vmem>>, %arg9: memref<256x64xbf16, #tpu.memory_space<vmem>>, %arg10: memref<256x128xbf16, #tpu.memory_space<vmem>>) attributes {dimension_semantics = [#tpu.dimension_semantics<parallel>, #tpu.dimension_semantics<parallel>], iteration_bounds = array<i64: 1, 2>, scalar_prefetch = 0 : i64, scratch_operands = 0 : i64, tpu.core_type = #tpu.core_type<tc>, window_params = [{transform_indices = @transform_0, window_bounds = array<i64: 256, 64>}, {transform_indices = @transform_1, window_bounds = array<i64: 64, 64>}, {transform_indices = @transform_2, window_bounds = array<i64: 1, 64>}, {transform_indices = @transform_3, window_bounds = array<i64: 64, 128>}, {transform_indices = @transform_4, window_bounds = array<i64: 1, 128>}, {pipeline_mode = #tpu.pipeline_mode<synchronous>, transform_indices = @transform_5, window_bounds = array<i64: 1, 64>}, {pipeline_mode = #tpu.pipeline_mode<synchronous>, transform_indices = @transform_6, window_bounds = array<i64: 1, 64>}, {transform_indices = @transform_7, window_bounds = array<i64: 256, 64>}, {transform_indices = @transform_8, window_bounds = array<i64: 256, 128>}]} {
    %c0 = arith.constant 0 : index
    %c0_0 = arith.constant 0 : index
    %0 = vector.load %arg2[%c0, %c0_0] : memref<256x64xf32, #tpu.memory_space<vmem>>, vector<256x64xf32>
    %cst = arith.constant dense<0.000000e+00> : vector<256xf32>
    %1 = vector.multi_reduction <add>, %0, %cst [1] : vector<256x64xf32> to vector<256xf32>
    %2 = vector.shape_cast %1 : vector<256xf32> to vector<256x1xf32>
    %cst_1 = arith.constant 6.400000e+01 : f32
    %3 = vector.broadcast %cst_1 : f32 to vector<256x1xf32>
    %4 = arith.divf %2, %3 : vector<256x1xf32>
    %5 = vector.broadcast %4 : vector<256x1xf32> to vector<256x64xf32>
    %6 = arith.subf %0, %5 : vector<256x64xf32>
    %7 = arith.mulf %6, %6 : vector<256x64xf32>
    %cst_2 = arith.constant dense<0.000000e+00> : vector<256xf32>
    %8 = vector.multi_reduction <add>, %7, %cst_2 [1] : vector<256x64xf32> to vector<256xf32>
    %9 = vector.shape_cast %8 : vector<256xf32> to vector<256x1xf32>
    %cst_3 = arith.constant 6.400000e+01 : f32
    %10 = vector.broadcast %cst_3 : f32 to vector<256x1xf32>
    %11 = arith.divf %9, %10 : vector<256x1xf32>
    %cst_4 = arith.constant 9.99999974E-6 : f32
    %12 = vector.broadcast %cst_4 : f32 to vector<256x1xf32>
    %13 = arith.addf %11, %12 : vector<256x1xf32>
    %14 = math.rsqrt %13 : vector<256x1xf32>
    %15 = vector.broadcast %14 : vector<256x1xf32> to vector<256x64xf32>
    %16 = arith.mulf %6, %15 : vector<256x64xf32>
    %c0_5 = arith.constant 0 : index
    %c0_6 = arith.constant 0 : index
    %17 = vector.load %arg7[%c0_5, %c0_6] : memref<1x64xf32, #tpu.memory_space<vmem>>, vector<1x64xf32>
    %18 = vector.broadcast %17 : vector<1x64xf32> to vector<256x64xf32>
    %19 = arith.mulf %16, %18 : vector<256x64xf32>
    %c0_7 = arith.constant 0 : index
    %c0_8 = arith.constant 0 : index
    %20 = vector.load %arg8[%c0_7, %c0_8] : memref<1x64xf32, #tpu.memory_space<vmem>>, vector<1x64xf32>
    %21 = vector.broadcast %20 : vector<1x64xf32> to vector<256x64xf32>
    %22 = arith.addf %19, %21 : vector<256x64xf32>
    %23 = arith.truncf %22 : vector<256x64xf32> to vector<256x64xbf16>
    %c0_9 = arith.constant 0 : index
    %c0_10 = arith.constant 0 : index
    %24 = vector.load %arg3[%c0_9, %c0_10] : memref<64x64xbf16, #tpu.memory_space<vmem>>, vector<64x64xbf16>
    %cst_11 = arith.constant dense<0.000000e+00> : vector<256x64xf32>
    %25 = tpu.matmul %23, %24, %cst_11 {dimension_numbers = #tpu.dot_dimension_numbers<[1], [0], [0], [1], [0, 0, 1, 1], [], []>} : vector<256x64xbf16>, vector<64x64xbf16>, vector<256x64xf32> -> vector<256x64xf32>
    %c0_12 = arith.constant 0 : index
    %c0_13 = arith.constant 0 : index
    %26 = vector.load %arg4[%c0_12, %c0_13] : memref<1x64xf32, #tpu.memory_space<vmem>>, vector<1x64xf32>
    %27 = vector.broadcast %26 : vector<1x64xf32> to vector<256x64xf32>
    %28 = arith.addf %25, %27 : vector<256x64xf32>
    %29 = arith.truncf %28 : vector<256x64xf32> to vector<256x64xbf16>
    %c0_14 = arith.constant 0 : index
    %c0_15 = arith.constant 0 : index
    %30 = vector.load %arg9[%c0_14, %c0_15] : memref<256x64xbf16, #tpu.memory_space<vmem>>, vector<256x64xbf16>
    tpu.vector_store %arg9[%c0_14, %c0_15], %29 {strides = array<i32>} : memref<256x64xbf16, #tpu.memory_space<vmem>>, vector<256x64xbf16>,
    %c0_16 = arith.constant 0 : index
    %c0_17 = arith.constant 0 : index
    %31 = vector.load %arg5[%c0_16, %c0_17] : memref<64x128xbf16, #tpu.memory_space<vmem>>, vector<64x128xbf16>
    %cst_18 = arith.constant dense<0.000000e+00> : vector<256x128xf32>
    %32 = tpu.matmul %23, %31, %cst_18 {dimension_numbers = #tpu.dot_dimension_numbers<[1], [0], [0], [1], [0, 0, 1, 1], [], []>} : vector<256x64xbf16>, vector<64x128xbf16>, vector<256x128xf32> -> vector<256x128xf32>
    %c0_19 = arith.constant 0 : index
    %c0_20 = arith.constant 0 : index
    %33 = vector.load %arg6[%c0_19, %c0_20] : memref<1x128xf32, #tpu.memory_space<vmem>>, vector<1x128xf32>
    %34 = vector.broadcast %33 : vector<1x128xf32> to vector<256x128xf32>
    %35 = arith.addf %32, %34 : vector<256x128xf32>
    %36 = arith.truncf %35 : vector<256x128xf32> to vector<256x128xbf16>
    %c0_21 = arith.constant 0 : index
    %c0_22 = arith.constant 0 : index
    %37 = vector.load %arg10[%c0_21, %c0_22] : memref<256x128xbf16, #tpu.memory_space<vmem>>, vector<256x128xbf16>
    tpu.vector_store %arg10[%c0_21, %c0_22], %36 {strides = array<i32>} : memref<256x128xbf16, #tpu.memory_space<vmem>>, vector<256x128xbf16>,
    return
  }
  func.func @transform_0(%arg0: i32, %arg1: i32) -> (i32, i32) {
    %c0_i32 = arith.constant 0 : i32
    %c0_i32_0 = arith.constant 0 : i32
    return %arg1, %c0_i32 : i32, i32
  }
  func.func @transform_1(%arg0: i32, %arg1: i32) -> (i32, i32) {
    %c0_i32 = arith.constant 0 : i32
    %c0_i32_0 = arith.constant 0 : i32
    return %c0_i32, %arg0 : i32, i32
  }
  func.func @transform_2(%arg0: i32, %arg1: i32) -> (i32, i32) {
    %c0_i32 = arith.constant 0 : i32
    %c0_i32_0 = arith.constant 0 : i32
    return %c0_i32, %arg0 : i32, i32
  }
  func.func @transform_3(%arg0: i32, %arg1: i32) -> (i32, i32) {
    %c0_i32 = arith.constant 0 : i32
    %c0_i32_0 = arith.constant 0 : i32
    return %c0_i32, %arg0 : i32, i32
  }
  func.func @transform_4(%arg0: i32, %arg1: i32) -> (i32, i32) {
    %c0_i32 = arith.constant 0 : i32
    %c0_i32_0 = arith.constant 0 : i32
    return %c0_i32, %arg0 : i32, i32
  }
  func.func @transform_5(%arg0: i32, %arg1: i32) -> (i32, i32) {
    %c0_i32 = arith.constant 0 : i32
    %c0_i32_0 = arith.constant 0 : i32
    %c0_i32_1 = arith.constant 0 : i32
    return %c0_i32, %c0_i32_0 : i32, i32
  }
  func.func @transform_6(%arg0: i32, %arg1: i32) -> (i32, i32) {
    %c0_i32 = arith.constant 0 : i32
    %c0_i32_0 = arith.constant 0 : i32
    %c0_i32_1 = arith.constant 0 : i32
    return %c0_i32, %c0_i32_0 : i32, i32
  }
  func.func @transform_7(%arg0: i32, %arg1: i32) -> (i32, i32) {
    %c0_i32 = arith.constant 0 : i32
    return %arg1, %arg0 : i32, i32
  }
  func.func @transform_8(%arg0: i32, %arg1: i32) -> (i32, i32) {
    %c0_i32 = arith.constant 0 : i32
    return %arg1, %arg0 : i32, i32
  }
}

</mosaic_0001>

<llo_original>
// kernel: tpu_custom_call.1
$region0: #{tpu_custom_call.1}
  #allocation0 [shape = 'u32[]', space=smem, size = 0x4, offset = 0x4, fixed_abs, tag = 'smem constant byte address 0x4 - core index']
  #allocation1 [shape = 'u32[144,128]{1,0:T(1,128)}', space=vmem, size = 0x12000, scoped, tag = 'internal scratch']
  %s0 = inlined_call_operand.vmem [shape: f32[512,64], index: 0, kind: input, shape index: {}]
  %s1 = inlined_call_operand.vmem [shape: bf16[64,64], index: 1, kind: input, shape index: {}]
  %s2 = inlined_call_operand.vmem [shape: f32[1,64], index: 2, kind: input, shape index: {}]
  %s3 = inlined_call_operand.vmem [shape: bf16[64,128], index: 3, kind: input, shape index: {}]
  %s4 = inlined_call_operand.vmem [shape: f32[1,128], index: 4, kind: input, shape index: {}]
  %s5 = inlined_call_operand.vmem [shape: f32[1,64], index: 5, kind: input, shape index: {}]
  %s6 = inlined_call_operand.vmem [shape: f32[1,64], index: 6, kind: input, shape index: {}]
  %s7 = inlined_call_operand.vmem [shape: bf16[512,64], index: 7, kind: output, shape index: {0}]
  %s8 = inlined_call_operand.hbm [shape: bf16[512,128], index: 8, kind: output, shape index: {1}]
  %9 = xla_tuple %s7, %s8
  %s10 = sld [smem:[#allocation0]]
  $region69: #{tpu_custom_call.1} parent=0
    _
  %s12 = ssub.s32 1, %s10
  %s13 = scalar_select 0, %s12, %s10
  $region1: #{tpu_custom_call.1} parent=0
    #allocation2 [shape = 'u8[131072]{0}', space=vmem, size = 0x20000, scoped, tag = 'output window, operand 1']
    #allocation3 [shape = 's32[2]{0}', space=sflag, size = 0x8, scoped, tag = 'scoped memory for tpu_custom_call.1']
    %14 = vsyncpa [#allocation3], 0
    %s15 = scalar_lea.sflag [#allocation3], 1
    %16 = vsyncpa %s15, 0
    loop: start=0, step=1, limit=4
    $region2: #{tpu_custom_call.1} parent=1 // loop_pre_header
      _
    $region3: #{tpu_custom_call.1} parent=1 // loop_header
      %s18 = sphi 0, %s22
      %p19 = scmp.ge.s32.totalorder %s18, 4
      %s25 = sphi 0, %s37
      %s26 = sphi 0, %s33
      %s27 = sphi 0, %s25
      %s28 = sphi 0, %s26
      %s29 = sphi 0, %s27
      %s30 = sphi 0, %s28
      %s40 = sphi 0, %s42
      %s43 = sphi 0, %s40
      %s44 = sphi 0, %s43
      %s60 = sphi 0, %s44
      %s66 = sphi 0, %s68
      %s69 = sphi 0, %s66
      %s70 = sphi 0, %s69
      %s86 = sphi 0, %s70
      %s92 = sphi 0, %s94
      %s95 = sphi 0, %s92
      %s96 = sphi 0, %s95
      %s112 = sphi 0, %s96
      %s118 = sphi 0, %s120
      %s121 = sphi 0, %s118
      %s122 = sphi 0, %s121
      %s138 = sphi 0, %s122
      %s144 = sphi 0, %s146
      %s147 = sphi 0, %s144
      %s148 = sphi 0, %s147
      %s164 = sphi 0, %s148
      %s168 = sphi 0, %s168
      %s170 = sphi 0, %s168
      %s171 = sphi 0, %s170
      %s185 = sphi 0, %s171
      %s189 = sphi 0, %s189
      %s191 = sphi 0, %s189
      %s192 = sphi 0, %s191
      %s206 = sphi 0, %s192
      %s214 = sphi 0, %s216
      %s217 = sphi 0, %s214
      %s218 = sphi 0, %s217
      %s234 = sphi 0, %s218
      %s242 = sphi 0, %s244
      %s245 = sphi 0, %s242
      %s246 = sphi 0, %s245
      %s262 = sphi 0, %s246
    $region4: #{tpu_custom_call.1} parent=1 // loop_header_branch
      %21 = sbr.rel (%p19) target = $region8
    $region5: #{tpu_custom_call.1} parent=1 // loop_body
      %s23 = ssub.s32 %s18, 1
      %s24 = ssub.s32 %s18, 2
      %s31 = sadd.s32 1, %s26
      %p32 = scmp.ge.s32.totalorder %s31, 2
      %s33 = scalar_select %p32, 0, %s31
      %s34 = sadd.s32 1, %s25
      %s35 = scalar_select %p32, %s34, %s25
      %p36 = scmp.ge.s32.totalorder %s35, 1
      %s37 = scalar_select %p36, 0, %s35
      %s38 = ssub.s32 %s26, %s33
      %p39 = scmp.eq.s32.totalorder %s38, 0
      %s41 = sadd.s32 %s40, 1
      %s42 = scalar_select %p39, %s40, %s41
      %p45 = pneg %p39
      %p46 = scmp.eq.s32.totalorder %s18, 1
      %p47 = por %p45, %p46
      %p48 = scmp.ne.s32.totalorder %s40, %s43
      %p49 = scmp.eq.s32.totalorder %s18, 0
      %p50 = por %p48, %p49
      %p51 = scmp.ne.s32.totalorder %s40, %s43
      %p52 = scmp.eq.s32.totalorder %s23, 1
      %p53 = por %p51, %p52
      %p54 = scmp.ne.s32.totalorder %s43, %s44
      %p55 = scmp.eq.s32.totalorder %s23, 0
      %p56 = por %p54, %p55
      %p57 = scmp.ne.s32.totalorder %s43, %s44
      %p58 = scmp.eq.s32.totalorder %s24, 1
      %p59 = por %p57, %p58
      %p61 = scmp.ne.s32.totalorder %s44, %s60
      %p62 = scmp.eq.s32.totalorder %s24, 0
      %p63 = por %p61, %p62
      %s64 = ssub.s32 %s25, %s37
      %p65 = scmp.eq.s32.totalorder %s64, 0
      %s67 = sadd.s32 %s66, 1
      %s68 = scalar_select %p65, %s66, %s67
      %p71 = pneg %p65
      %p72 = scmp.eq.s32.totalorder %s18, 1
      %p73 = por %p71, %p72
      %p74 = scmp.ne.s32.totalorder %s66, %s69
      %p75 = scmp.eq.s32.totalorder %s18, 0
      %p76 = por %p74, %p75
      %p77 = scmp.ne.s32.totalorder %s66, %s69
      %p78 = scmp.eq.s32.totalorder %s23, 1
      %p79 = por %p77, %p78
      %p80 = scmp.ne.s32.totalorder %s69, %s70
      %p81 = scmp.eq.s32.totalorder %s23, 0
      %p82 = por %p80, %p81
      %p83 = scmp.ne.s32.totalorder %s69, %s70
      %p84 = scmp.eq.s32.totalorder %s24, 1
      %p85 = por %p83, %p84
      %p87 = scmp.ne.s32.totalorder %s70, %s86
      %p88 = scmp.eq.s32.totalorder %s24, 0
      %p89 = por %p87, %p88
      %s90 = ssub.s32 %s25, %s37
      %p91 = scmp.eq.s32.totalorder %s90, 0
      %s93 = sadd.s32 %s92, 1
      %s94 = scalar_select %p91, %s92, %s93
      %p97 = pneg %p91
      %p98 = scmp.eq.s32.totalorder %s18, 1
      %p99 = por %p97, %p98
      %p100 = scmp.ne.s32.totalorder %s92, %s95
      %p101 = scmp.eq.s32.totalorder %s18, 0
      %p102 = por %p100, %p101
      %p103 = scmp.ne.s32.totalorder %s92, %s95
      %p104 = scmp.eq.s32.totalorder %s23, 1
      %p105 = por %p103, %p104
      %p106 = scmp.ne.s32.totalorder %s95, %s96
      %p107 = scmp.eq.s32.totalorder %s23, 0
      %p108 = por %p106, %p107
      %p109 = scmp.ne.s32.totalorder %s95, %s96
      %p110 = scmp.eq.s32.totalorder %s24, 1
      %p111 = por %p109, %p110
      %p113 = scmp.ne.s32.totalorder %s96, %s112
      %p114 = scmp.eq.s32.totalorder %s24, 0
      %p115 = por %p113, %p114
      %s116 = ssub.s32 %s25, %s37
      %p117 = scmp.eq.s32.totalorder %s116, 0
      %s119 = sadd.s32 %s118, 1
      %s120 = scalar_select %p117, %s118, %s119
      %p123 = pneg %p117
      %p124 = scmp.eq.s32.totalorder %s18, 1
      %p125 = por %p123, %p124
      %p126 = scmp.ne.s32.totalorder %s118, %s121
      %p127 = scmp.eq.s32.totalorder %s18, 0
      %p128 = por %p126, %p127
      %p129 = scmp.ne.s32.totalorder %s118, %s121
      %p130 = scmp.eq.s32.totalorder %s23, 1
      %p131 = por %p129, %p130
      %p132 = scmp.ne.s32.totalorder %s121, %s122
      %p133 = scmp.eq.s32.totalorder %s23, 0
      %p134 = por %p132, %p133
      %p135 = scmp.ne.s32.totalorder %s121, %s122
      %p136 = scmp.eq.s32.totalorder %s24, 1
      %p137 = por %p135, %p136
      %p139 = scmp.ne.s32.totalorder %s122, %s138
      %p140 = scmp.eq.s32.totalorder %s24, 0
      %p141 = por %p139, %p140
      %s142 = ssub.s32 %s25, %s37
      %p143 = scmp.eq.s32.totalorder %s142, 0
      %s145 = sadd.s32 %s144, 1
      %s146 = scalar_select %p143, %s144, %s145
      %p149 = pneg %p143
      %p150 = scmp.eq.s32.totalorder %s18, 1
      %p151 = por %p149, %p150
      %p152 = scmp.ne.s32.totalorder %s144, %s147
      %p153 = scmp.eq.s32.totalorder %s18, 0
      %p154 = por %p152, %p153
      %p155 = scmp.ne.s32.totalorder %s144, %s147
      %p156 = scmp.eq.s32.totalorder %s23, 1
      %p157 = por %p155, %p156
      %p158 = scmp.ne.s32.totalorder %s147, %s148
      %p159 = scmp.eq.s32.totalorder %s23, 0
      %p160 = por %p158, %p159
      %p161 = scmp.ne.s32.totalorder %s147, %s148
      %p162 = scmp.eq.s32.totalorder %s24, 1
      %p163 = por %p161, %p162
      %p165 = scmp.ne.s32.totalorder %s148, %s164
      %p166 = scmp.eq.s32.totalorder %s24, 0
      %p167 = por %p165, %p166
      %s169 = sadd.s32 %s168, 1
      %p172 = scmp.eq.s32.totalorder %s18, 1
      %p173 = scmp.ne.s32.totalorder %s168, %s170
      %p174 = scmp.eq.s32.totalorder %s18, 0
      %p175 = por %p173, %p174
      %p176 = scmp.ne.s32.totalorder %s168, %s170
      %p177 = scmp.eq.s32.totalorder %s23, 1
      %p178 = por %p176, %p177
      %p179 = scmp.ne.s32.totalorder %s170, %s171
      %p180 = scmp.eq.s32.totalorder %s23, 0
      %p181 = por %p179, %p180
      %p182 = scmp.ne.s32.totalorder %s170, %s171
      %p183 = scmp.eq.s32.totalorder %s24, 1
      %p184 = por %p182, %p183
      %p186 = scmp.ne.s32.totalorder %s171, %s185
      %p187 = scmp.eq.s32.totalorder %s24, 0
      %p188 = por %p186, %p187
      %s190 = sadd.s32 %s189, 1
      %p193 = scmp.eq.s32.totalorder %s18, 1
      %p194 = scmp.ne.s32.totalorder %s189, %s191
      %p195 = scmp.eq.s32.totalorder %s18, 0
      %p196 = por %p194, %p195
      %p197 = scmp.ne.s32.totalorder %s189, %s191
      %p198 = scmp.eq.s32.totalorder %s23, 1
      %p199 = por %p197, %p198
      %p200 = scmp.ne.s32.totalorder %s191, %s192
      %p201 = scmp.eq.s32.totalorder %s23, 0
      %p202 = por %p200, %p201
      %p203 = scmp.ne.s32.totalorder %s191, %s192
      %p204 = scmp.eq.s32.totalorder %s24, 1
      %p205 = por %p203, %p204
      %p207 = scmp.ne.s32.totalorder %s192, %s206
      %p208 = scmp.eq.s32.totalorder %s24, 0
      %p209 = por %p207, %p208
      %s210 = ssub.s32 %s26, %s33
      %s211 = ssub.s32 %s25, %s37
      %s212 = sor.u32 %s210, %s211
      %p213 = scmp.eq.s32.totalorder %s212, 0
      %s215 = sadd.s32 %s214, 1
      %s216 = scalar_select %p213, %s214, %s215
      %p219 = pneg %p213
      %p220 = scmp.eq.s32.totalorder %s18, 1
      %p221 = por %p219, %p220
      %p222 = scmp.ne.s32.totalorder %s214, %s217
      %p223 = scmp.eq.s32.totalorder %s18, 0
      %p224 = por %p222, %p223
      %p225 = scmp.ne.s32.totalorder %s214, %s217
      %p226 = scmp.eq.s32.totalorder %s23, 1
      %p227 = por %p225, %p226
      %p228 = scmp.ne.s32.totalorder %s217, %s218
      %p229 = scmp.eq.s32.totalorder %s23, 0
      %p230 = por %p228, %p229
      %p231 = scmp.ne.s32.totalorder %s217, %s218
      %p232 = scmp.eq.s32.totalorder %s24, 1
      %p233 = por %p231, %p232
      %p235 = scmp.ne.s32.totalorder %s218, %s234
      %p236 = scmp.eq.s32.totalorder %s24, 0
      %p237 = por %p235, %p236
      %s238 = ssub.s32 %s26, %s33
      %s239 = ssub.s32 %s25, %s37
      %s240 = sor.u32 %s238, %s239
      %p241 = scmp.eq.s32.totalorder %s240, 0
      %s243 = sadd.s32 %s242, 1
      %s244 = scalar_select %p241, %s242, %s243
      %p247 = pneg %p241
      %p248 = scmp.eq.s32.totalorder %s18, 1
      %p249 = por %p247, %p248
      %p250 = scmp.ne.s32.totalorder %s242, %s245
      %p251 = scmp.eq.s32.totalorder %s18, 0
      %p252 = por %p250, %p251
      %p253 = scmp.ne.s32.totalorder %s242, %s245
      %p254 = scmp.eq.s32.totalorder %s23, 1
      %p255 = por %p253, %p254
      %p256 = scmp.ne.s32.totalorder %s245, %s246
      %p257 = scmp.eq.s32.totalorder %s23, 0
      %p258 = por %p256, %p257
      %p259 = scmp.ne.s32.totalorder %s245, %s246
      %p260 = scmp.eq.s32.totalorder %s24, 1
      %p261 = por %p259, %p260
      %p263 = scmp.ne.s32.totalorder %s246, %s262
      %p264 = scmp.eq.s32.totalorder %s24, 0
      %p265 = por %p263, %p264
      %p266 = scmp.le.s32.totalorder 1, %s18
      %p267 = scmp.lt.s32.totalorder %s18, 3
      %p268 = pnand %p266, %p267
      %p269 = pneg %p268
      // Predicated region
      $region9: #{tpu_custom_call.1} parent=5 // pred_check
        _
      $region10: #{tpu_custom_call.1} parent=5 // pred_check_branch
        %271 = sbr.rel (%p268) target = $region12
      $region11: #{tpu_custom_call.1} parent=5 // pred_region
        %s272 = ssub.s32 %s18, 1
        // Predicated region
        $region13: #{tpu_custom_call.1} parent=11 // pred_check
          %p273 = pneg %p82
        $region14: #{tpu_custom_call.1} parent=11 // pred_check_branch
          %275 = sbr.rel (%p273) target = $region16
        $region15: #{tpu_custom_call.1} parent=11 // pred_region
          %p276 = scmp.lt.s32.totalorder %s27, 0
          %s277 = scalar_select %p276, %s27, 0
          %s278 = smul.addr %s277, 4
          %s279 = scalar_lea.vmem %s1, %s278
        $region16: #{tpu_custom_call.1} parent=11 // pred_fallthru
          _
        // Predicated region
        $region17: #{tpu_custom_call.1} parent=11 // pred_check
          %p280 = pneg %p108
        $region18: #{tpu_custom_call.1} parent=11 // pred_check_branch
          %282 = sbr.rel (%p280) target = $region20
        $region19: #{tpu_custom_call.1} parent=11 // pred_region
          %p283 = scmp.lt.s32.totalorder %s27, 0
          %s284 = scalar_select %p283, %s27, 0
          %s285 = scalar_lea.vmem %s2, %s284
        $region20: #{tpu_custom_call.1} parent=11 // pred_fallthru
          _
        // Predicated region
        $region21: #{tpu_custom_call.1} parent=11 // pred_check
          %p286 = pneg %p134
        $region22: #{tpu_custom_call.1} parent=11 // pred_check_branch
          %288 = sbr.rel (%p286) target = $region24
        $region23: #{tpu_custom_call.1} parent=11 // pred_region
          %p289 = scmp.lt.s32.totalorder %s27, 0
          %s290 = scalar_select %p289, %s27, 0
          %s291 = smul.addr %s290, 4
          %s292 = scalar_lea.vmem %s3, %s291
        $region24: #{tpu_custom_call.1} parent=11 // pred_fallthru
          _
        // Predicated region
        $region25: #{tpu_custom_call.1} parent=11 // pred_check
          %p293 = pneg %p160
        $region26: #{tpu_custom_call.1} parent=11 // pred_check_branch
          %295 = sbr.rel (%p293) target = $region28
        $region27: #{tpu_custom_call.1} parent=11 // pred_region
          %p296 = scmp.lt.s32.totalorder %s27, 0
          %s297 = scalar_select %p296, %s27, 0
          %s298 = scalar_lea.vmem %s4, %s297
        $region28: #{tpu_custom_call.1} parent=11 // pred_fallthru
          _
        // Predicated region
        $region29: #{tpu_custom_call.1} parent=11 // pred_check
          %p299 = pneg %p181
        $region30: #{tpu_custom_call.1} parent=11 // pred_check_branch
          %301 = sbr.rel (%p299) target = $region32
        $region31: #{tpu_custom_call.1} parent=11 // pred_region
          _
        $region32: #{tpu_custom_call.1} parent=11 // pred_fallthru
          _
        // Predicated region
        $region33: #{tpu_custom_call.1} parent=11 // pred_check
          %p302 = pneg %p202
        $region34: #{tpu_custom_call.1} parent=11 // pred_check_branch
          %304 = sbr.rel (%p302) target = $region36
        $region35: #{tpu_custom_call.1} parent=11 // pred_region
          _
        $region36: #{tpu_custom_call.1} parent=11 // pred_fallthru
          _
      $region12: #{tpu_custom_call.1} parent=5 // pred_fallthru
        _
      %p305 = scmp.lt.s32.totalorder %s18, 2
      // Predicated region
      $region37: #{tpu_custom_call.1} parent=5 // pred_check
        %p306 = pneg %p305
      $region38: #{tpu_custom_call.1} parent=5 // pred_check_branch
        %308 = sbr.rel (%p306) target = $region40
      $region39: #{tpu_custom_call.1} parent=5 // pred_region
        // Predicated region
        $region41: #{tpu_custom_call.1} parent=39 // pred_check
          %p309 = pneg %p50
        $region42: #{tpu_custom_call.1} parent=39 // pred_check_branch
          %311 = sbr.rel (%p309) target = $region44
        $region43: #{tpu_custom_call.1} parent=39 // pred_region
          %s312 = smul.u32 32, %s26
          %p313 = scmp.lt.s32.totalorder %s312, 63
          %s314 = scalar_select %p313, %s312, 63
          %s315 = smul.addr %s314, 8
          %s316 = scalar_lea.vmem %s0, %s315
          %s317 = smul.u32 32, %s26
        $region44: #{tpu_custom_call.1} parent=39 // pred_fallthru
          _
      $region40: #{tpu_custom_call.1} parent=5 // pred_fallthru
        _
      %p318 = scmp.le.s32.totalorder 1, %s18
      %p319 = scmp.lt.s32.totalorder %s18, 3
      %p320 = pnand %p318, %p319
      %p321 = pneg %p320
      // Predicated region
      $region45: #{tpu_custom_call.1} parent=5 // pred_check
        _
      $region46: #{tpu_custom_call.1} parent=5 // pred_check_branch
        %323 = sbr.rel (%p320) target = $region48
      $region47: #{tpu_custom_call.1} parent=5 // pred_region
        %s324 = ssub.s32 %s18, 1
        %s325 = smul.u32 32, %s28
        %p326 = scmp.lt.s32.totalorder %s325, 63
        %s327 = scalar_select %p326, %s325, 63
        %s328 = smul.addr %s327, 8
        %s329 = scalar_lea.vmem %s0, %s328
        %p330 = pneg %p56
        %p331 = pneg %p53
        %p332 = scmp.lt.s32.totalorder %s27, 0
        %s333 = scalar_select %p332, %s27, 0
        %s334 = smul.addr %s333, 4
        %s335 = scalar_lea.vmem %s1, %s334
        %p336 = pneg %p82
        %p337 = pneg %p79
        %p338 = scmp.lt.s32.totalorder %s27, 0
        %s339 = scalar_select %p338, %s27, 0
        %s340 = scalar_lea.vmem %s2, %s339
        %p341 = pneg %p108
        %p342 = pneg %p105
        %p343 = scmp.lt.s32.totalorder %s27, 0
        %s344 = scalar_select %p343, %s27, 0
        %s345 = smul.addr %s344, 4
        %s346 = scalar_lea.vmem %s3, %s345
        %p347 = pneg %p134
        %p348 = pneg %p131
        %p349 = scmp.lt.s32.totalorder %s27, 0
        %s350 = scalar_select %p349, %s27, 0
        %s351 = scalar_lea.vmem %s4, %s350
        %p352 = pneg %p160
        %p353 = pneg %p157
        %p354 = pneg %p181
        %p355 = pneg %p178
        %p356 = pneg %p202
        %p357 = pneg %p199
        %p358 = pneg %p230
        %p359 = pneg %p227
        %s360 = smul.u32 32, %s28
        %p361 = scmp.lt.s32.totalorder %s360, 63
        %s362 = scalar_select %p361, %s360, 63
        %p363 = scmp.lt.s32.totalorder %s27, 0
        %s364 = scalar_select %p363, %s27, 0
        %s365 = sadd.s32 %s364, %s362
        %s366 = smul.addr %s365, 4
        %s367 = scalar_lea.vmem %s7, %s366
        %p368 = pneg %p258
        %p369 = pneg %p255
        %s370 = sand.u32 %s245, 1
        %s371 = scalar_lea.sflag [#allocation3], %s370
        %s372 = sand.u32 %s245, 1
        %s373 = smul.addr %s372, 128
        %s374 = scalar_lea.vmem [#allocation2], %s373
        %s375 = smul.u32 32, %s28
        %p376 = scmp.lt.s32.totalorder %s375, 63
        %s377 = scalar_select %p376, %s375, 63
        %s378 = smul.addr %s377, 8
        %s379 = scalar_lea.vmem %s0, %s378
        %s380 = smul.u32 32, %s28
        %p381 = scmp.lt.s32.totalorder %s27, 0
        %s382 = scalar_select %p381, %s27, 0
        %s383 = smul.addr %s382, 4
        %s384 = scalar_lea.vmem %s1, %s383
        %p385 = scmp.lt.s32.totalorder %s27, 0
        %s386 = scalar_select %p385, %s27, 0
        %s387 = scalar_lea.vmem %s2, %s386
        %p388 = scmp.lt.s32.totalorder %s27, 0
        %s389 = scalar_select %p388, %s27, 0
        %s390 = smul.addr %s389, 4
        %s391 = scalar_lea.vmem %s3, %s390
        %p392 = scmp.lt.s32.totalorder %s27, 0
        %s393 = scalar_select %p392, %s27, 0
        %s394 = scalar_lea.vmem %s4, %s393
        %s395 = smul.u32 32, %s28
        %p396 = scmp.lt.s32.totalorder %s395, 63
        %s397 = scalar_select %p396, %s395, 63
        %p398 = scmp.lt.s32.totalorder %s27, 0
        %s399 = scalar_select %p398, %s27, 0
        %s400 = sadd.s32 %s399, %s397
        %s401 = smul.addr %s400, 4
        %s402 = scalar_lea.vmem %s7, %s401
        %s403 = smul.u32 32, %s28
        %s404 = smul.u32 32, %s28
        %v406 = vld [vmem:[%s379] sm:$0xff]
        %v407 = vld [vmem:[%s379 + $0x8] sm:$0xff]
        %v408 = vld [vmem:[%s379 + $0x10] sm:$0xff]
        %v409 = vld [vmem:[%s379 + $0x18] sm:$0xff]
        %v410 = vld [vmem:[%s379 + $0x20] sm:$0xff]
        %v411 = vld [vmem:[%s379 + $0x28] sm:$0xff]
        %v412 = vld [vmem:[%s379 + $0x30] sm:$0xff]
        %v413 = vld [vmem:[%s379 + $0x38] sm:$0xff]
        %v414 = vld [vmem:[%s379 + $0x40] sm:$0xff]
        %v415 = vld [vmem:[%s379 + $0x48] sm:$0xff]
        %v416 = vld [vmem:[%s379 + $0x50] sm:$0xff]
        %v417 = vld [vmem:[%s379 + $0x58] sm:$0xff]
        %v418 = vld [vmem:[%s379 + $0x60] sm:$0xff]
        %v419 = vld [vmem:[%s379 + $0x68] sm:$0xff]
        %v420 = vld [vmem:[%s379 + $0x70] sm:$0xff]
        %v421 = vld [vmem:[%s379 + $0x78] sm:$0xff]
        %v422 = vld [vmem:[%s379 + $0x80] sm:$0xff]
        %v423 = vld [vmem:[%s379 + $0x88] sm:$0xff]
        %v424 = vld [vmem:[%s379 + $0x90] sm:$0xff]
        %v425 = vld [vmem:[%s379 + $0x98] sm:$0xff]
        %v426 = vld [vmem:[%s379 + $0xa0] sm:$0xff]
        %v427 = vld [vmem:[%s379 + $0xa8] sm:$0xff]
        %v428 = vld [vmem:[%s379 + $0xb0] sm:$0xff]
        %v429 = vld [vmem:[%s379 + $0xb8] sm:$0xff]
        %v430 = vld [vmem:[%s379 + $0xc0] sm:$0xff]
        %v431 = vld [vmem:[%s379 + $0xc8] sm:$0xff]
        %v432 = vld [vmem:[%s379 + $0xd0] sm:$0xff]
        %v433 = vld [vmem:[%s379 + $0xd8] sm:$0xff]
        %v434 = vld [vmem:[%s379 + $0xe0] sm:$0xff]
        %v435 = vld [vmem:[%s379 + $0xe8] sm:$0xff]
        %v436 = vld [vmem:[%s379 + $0xf0] sm:$0xff]
        %v437 = vld [vmem:[%s379 + $0xf8] sm:$0xff]
        %vm438 = vcmask 523264
        %v439 = vsel %vm438, %v406, 0.0
        %440 = vadd.xlane.f32.xlu0 %v439
        %v441 = vpop.xlane.xlu0 %440
        %v442 = vsel %vm438, %v407, 0.0
        %443 = vadd.xlane.f32.xlu0 %v442
        %v444 = vpop.xlane.xlu0 %443
        %v445 = vsel %vm438, %v408, 0.0
        %446 = vadd.xlane.f32.xlu0 %v445
        %v447 = vpop.xlane.xlu0 %446
        %v448 = vsel %vm438, %v409, 0.0
        %449 = vadd.xlane.f32.xlu0 %v448
        %v450 = vpop.xlane.xlu0 %449
        %v451 = vsel %vm438, %v410, 0.0
        %452 = vadd.xlane.f32.xlu0 %v451
        %v453 = vpop.xlane.xlu0 %452
        %v454 = vsel %vm438, %v411, 0.0
        %455 = vadd.xlane.f32.xlu0 %v454
        %v456 = vpop.xlane.xlu0 %455
        %v457 = vsel %vm438, %v412, 0.0
        %458 = vadd.xlane.f32.xlu0 %v457
        %v459 = vpop.xlane.xlu0 %458
        %v460 = vsel %vm438, %v413, 0.0
        %461 = vadd.xlane.f32.xlu0 %v460
        %v462 = vpop.xlane.xlu0 %461
        %v463 = vsel %vm438, %v414, 0.0
        %464 = vadd.xlane.f32.xlu0 %v463
        %v465 = vpop.xlane.xlu0 %464
        %v466 = vsel %vm438, %v415, 0.0
        %467 = vadd.xlane.f32.xlu0 %v466
        %v468 = vpop.xlane.xlu0 %467
        %v469 = vsel %vm438, %v416, 0.0
        %470 = vadd.xlane.f32.xlu0 %v469
        %v471 = vpop.xlane.xlu0 %470
        %v472 = vsel %vm438, %v417, 0.0
        %473 = vadd.xlane.f32.xlu0 %v472
        %v474 = vpop.xlane.xlu0 %473
        %v475 = vsel %vm438, %v418, 0.0
        %476 = vadd.xlane.f32.xlu0 %v475
        %v477 = vpop.xlane.xlu0 %476
        %v478 = vsel %vm438, %v419, 0.0
        %479 = vadd.xlane.f32.xlu0 %v478
        %v480 = vpop.xlane.xlu0 %479
        %v481 = vsel %vm438, %v420, 0.0
        %482 = vadd.xlane.f32.xlu0 %v481
        %v483 = vpop.xlane.xlu0 %482
        %v484 = vsel %vm438, %v421, 0.0
        %485 = vadd.xlane.f32.xlu0 %v484
        %v486 = vpop.xlane.xlu0 %485
        %v487 = vsel %vm438, %v422, 0.0
        %488 = vadd.xlane.f32.xlu0 %v487
        %v489 = vpop.xlane.xlu0 %488
        %v490 = vsel %vm438, %v423, 0.0
        %491 = vadd.xlane.f32.xlu0 %v490
        %v492 = vpop.xlane.xlu0 %491
        %v493 = vsel %vm438, %v424, 0.0
        %494 = vadd.xlane.f32.xlu0 %v493
        %v495 = vpop.xlane.xlu0 %494
        %v496 = vsel %vm438, %v425, 0.0
        %497 = vadd.xlane.f32.xlu0 %v496
        %v498 = vpop.xlane.xlu0 %497
        %v499 = vsel %vm438, %v426, 0.0
        %500 = vadd.xlane.f32.xlu0 %v499
        %v501 = vpop.xlane.xlu0 %500
        %v502 = vsel %vm438, %v427, 0.0
        %503 = vadd.xlane.f32.xlu0 %v502
        %v504 = vpop.xlane.xlu0 %503
        %v505 = vsel %vm438, %v428, 0.0
        %506 = vadd.xlane.f32.xlu0 %v505
        %v507 = vpop.xlane.xlu0 %506
        %v508 = vsel %vm438, %v429, 0.0
        %509 = vadd.xlane.f32.xlu0 %v508
        %v510 = vpop.xlane.xlu0 %509
        %v511 = vsel %vm438, %v430, 0.0
        %512 = vadd.xlane.f32.xlu0 %v511
        %v513 = vpop.xlane.xlu0 %512
        %v514 = vsel %vm438, %v431, 0.0
        %515 = vadd.xlane.f32.xlu0 %v514
        %v516 = vpop.xlane.xlu0 %515
        %v517 = vsel %vm438, %v432, 0.0
        %518 = vadd.xlane.f32.xlu0 %v517
        %v519 = vpop.xlane.xlu0 %518
        %v520 = vsel %vm438, %v433, 0.0
        %521 = vadd.xlane.f32.xlu0 %v520
        %v522 = vpop.xlane.xlu0 %521
        %v523 = vsel %vm438, %v434, 0.0
        %524 = vadd.xlane.f32.xlu0 %v523
        %v525 = vpop.xlane.xlu0 %524
        %v526 = vsel %vm438, %v435, 0.0
        %527 = vadd.xlane.f32.xlu0 %v526
        %v528 = vpop.xlane.xlu0 %527
        %v529 = vsel %vm438, %v436, 0.0
        %530 = vadd.xlane.f32.xlu0 %v529
        %v531 = vpop.xlane.xlu0 %530
        %v532 = vsel %vm438, %v437, 0.0
        %533 = vadd.xlane.f32.xlu0 %v532
        %v534 = vpop.xlane.xlu0 %533
        %v535 = vrcp.pop 64.0
        %v536 = vmul.f32 %v441, %v535
        %v537 = vmul.f32 %v444, %v535
        %v538 = vmul.f32 %v447, %v535
        %v539 = vmul.f32 %v450, %v535
        %v540 = vmul.f32 %v453, %v535
        %v541 = vmul.f32 %v456, %v535
        %v542 = vmul.f32 %v459, %v535
        %v543 = vmul.f32 %v462, %v535
        %v544 = vmul.f32 %v465, %v535
        %v545 = vmul.f32 %v468, %v535
        %v546 = vmul.f32 %v471, %v535
        %v547 = vmul.f32 %v474, %v535
        %v548 = vmul.f32 %v477, %v535
        %v549 = vmul.f32 %v480, %v535
        %v550 = vmul.f32 %v483, %v535
        %v551 = vmul.f32 %v486, %v535
        %v552 = vmul.f32 %v489, %v535
        %v553 = vmul.f32 %v492, %v535
        %v554 = vmul.f32 %v495, %v535
        %v555 = vmul.f32 %v498, %v535
        %v556 = vmul.f32 %v501, %v535
        %v557 = vmul.f32 %v504, %v535
        %v558 = vmul.f32 %v507, %v535
        %v559 = vmul.f32 %v510, %v535
        %v560 = vmul.f32 %v513, %v535
        %v561 = vmul.f32 %v516, %v535
        %v562 = vmul.f32 %v519, %v535
        %v563 = vmul.f32 %v522, %v535
        %v564 = vmul.f32 %v525, %v535
        %v565 = vmul.f32 %v528, %v535
        %v566 = vmul.f32 %v531, %v535
        %v567 = vmul.f32 %v534, %v535
        %v568 = vsub.f32 %v406, %v536
        %v569 = vsub.f32 %v407, %v537
        %v570 = vsub.f32 %v408, %v538
        %v571 = vsub.f32 %v409, %v539
        %v572 = vsub.f32 %v410, %v540
        %v573 = vsub.f32 %v411, %v541
        %v574 = vsub.f32 %v412, %v542
        %v575 = vsub.f32 %v413, %v543
        %v576 = vsub.f32 %v414, %v544
        %v577 = vsub.f32 %v415, %v545
        %v578 = vsub.f32 %v416, %v546
        %v579 = vsub.f32 %v417, %v547
        %v580 = vsub.f32 %v418, %v548
        %v581 = vsub.f32 %v419, %v549
        %v582 = vsub.f32 %v420, %v550
        %v583 = vsub.f32 %v421, %v551
        %v584 = vsub.f32 %v422, %v552
        %v585 = vsub.f32 %v423, %v553
        %v586 = vsub.f32 %v424, %v554
        %v587 = vsub.f32 %v425, %v555
        %v588 = vsub.f32 %v426, %v556
        %v589 = vsub.f32 %v427, %v557
        %v590 = vsub.f32 %v428, %v558
        %v591 = vsub.f32 %v429, %v559
        %v592 = vsub.f32 %v430, %v560
        %v593 = vsub.f32 %v431, %v561
        %v594 = vsub.f32 %v432, %v562
        %v595 = vsub.f32 %v433, %v563
        %v596 = vsub.f32 %v434, %v564
        %v597 = vsub.f32 %v435, %v565
        %v598 = vsub.f32 %v436, %v566
        %v599 = vsub.f32 %v437, %v567
        %v600 = vmul.f32 %v568, %v568
        %v601 = vmul.f32 %v569, %v569
        %v602 = vmul.f32 %v570, %v570
        %v603 = vmul.f32 %v571, %v571
        %v604 = vmul.f32 %v572, %v572
        %v605 = vmul.f32 %v573, %v573
        %v606 = vmul.f32 %v574, %v574
        %v607 = vmul.f32 %v575, %v575
        %v608 = vmul.f32 %v576, %v576
        %v609 = vmul.f32 %v577, %v577
        %v610 = vmul.f32 %v578, %v578
        %v611 = vmul.f32 %v579, %v579
        %v612 = vmul.f32 %v580, %v580
        %v613 = vmul.f32 %v581, %v581
        %v614 = vmul.f32 %v582, %v582
        %v615 = vmul.f32 %v583, %v583
        %v616 = vmul.f32 %v584, %v584
        %v617 = vmul.f32 %v585, %v585
        %v618 = vmul.f32 %v586, %v586
        %v619 = vmul.f32 %v587, %v587
        %v620 = vmul.f32 %v588, %v588
        %v621 = vmul.f32 %v589, %v589
        %v622 = vmul.f32 %v590, %v590
        %v623 = vmul.f32 %v591, %v591
        %v624 = vmul.f32 %v592, %v592
        %v625 = vmul.f32 %v593, %v593
        %v626 = vmul.f32 %v594, %v594
        %v627 = vmul.f32 %v595, %v595
        %v628 = vmul.f32 %v596, %v596
        %v629 = vmul.f32 %v597, %v597
        %v630 = vmul.f32 %v598, %v598
        %v631 = vmul.f32 %v599, %v599
        %v632 = vsel %vm438, %v600, 0.0
        %633 = vadd.xlane.f32.xlu0 %v632
        %v634 = vpop.xlane.xlu0 %633
        %v635 = vsel %vm438, %v601, 0.0
        %636 = vadd.xlane.f32.xlu0 %v635
        %v637 = vpop.xlane.xlu0 %636
        %v638 = vsel %vm438, %v602, 0.0
        %639 = vadd.xlane.f32.xlu0 %v638
        %v640 = vpop.xlane.xlu0 %639
        %v641 = vsel %vm438, %v603, 0.0
        %642 = vadd.xlane.f32.xlu0 %v641
        %v643 = vpop.xlane.xlu0 %642
        %v644 = vsel %vm438, %v604, 0.0
        %645 = vadd.xlane.f32.xlu0 %v644
        %v646 = vpop.xlane.xlu0 %645
        %v647 = vsel %vm438, %v605, 0.0
        %648 = vadd.xlane.f32.xlu0 %v647
        %v649 = vpop.xlane.xlu0 %648
        %v650 = vsel %vm438, %v606, 0.0
        %651 = vadd.xlane.f32.xlu0 %v650
        %v652 = vpop.xlane.xlu0 %651
        %v653 = vsel %vm438, %v607, 0.0
        %654 = vadd.xlane.f32.xlu0 %v653
        %v655 = vpop.xlane.xlu0 %654
        %v656 = vsel %vm438, %v608, 0.0
        %657 = vadd.xlane.f32.xlu0 %v656
        %v658 = vpop.xlane.xlu0 %657
        %v659 = vsel %vm438, %v609, 0.0
        %660 = vadd.xlane.f32.xlu0 %v659
        %v661 = vpop.xlane.xlu0 %660
        %v662 = vsel %vm438, %v610, 0.0
        %663 = vadd.xlane.f32.xlu0 %v662
        %v664 = vpop.xlane.xlu0 %663
        %v665 = vsel %vm438, %v611, 0.0
        %666 = vadd.xlane.f32.xlu0 %v665
        %v667 = vpop.xlane.xlu0 %666
        %v668 = vsel %vm438, %v612, 0.0
        %669 = vadd.xlane.f32.xlu0 %v668
        %v670 = vpop.xlane.xlu0 %669
        %v671 = vsel %vm438, %v613, 0.0
        %672 = vadd.xlane.f32.xlu0 %v671
        %v673 = vpop.xlane.xlu0 %672
        %v674 = vsel %vm438, %v614, 0.0
        %675 = vadd.xlane.f32.xlu0 %v674
        %v676 = vpop.xlane.xlu0 %675
        %v677 = vsel %vm438, %v615, 0.0
        %678 = vadd.xlane.f32.xlu0 %v677
        %v679 = vpop.xlane.xlu0 %678
        %v680 = vsel %vm438, %v616, 0.0
        %681 = vadd.xlane.f32.xlu0 %v680
        %v682 = vpop.xlane.xlu0 %681
        %v683 = vsel %vm438, %v617, 0.0
        %684 = vadd.xlane.f32.xlu0 %v683
        %v685 = vpop.xlane.xlu0 %684
        %v686 = vsel %vm438, %v618, 0.0
        %687 = vadd.xlane.f32.xlu0 %v686
        %v688 = vpop.xlane.xlu0 %687
        %v689 = vsel %vm438, %v619, 0.0
        %690 = vadd.xlane.f32.xlu0 %v689
        %v691 = vpop.xlane.xlu0 %690
        %v692 = vsel %vm438, %v620, 0.0
        %693 = vadd.xlane.f32.xlu0 %v692
        %v694 = vpop.xlane.xlu0 %693
        %v695 = vsel %vm438, %v621, 0.0
        %696 = vadd.xlane.f32.xlu0 %v695
        %v697 = vpop.xlane.xlu0 %696
        %v698 = vsel %vm438, %v622, 0.0
        %699 = vadd.xlane.f32.xlu0 %v698
        %v700 = vpop.xlane.xlu0 %699
        %v701 = vsel %vm438, %v623, 0.0
        %702 = vadd.xlane.f32.xlu0 %v701
        %v703 = vpop.xlane.xlu0 %702
        %v704 = vsel %vm438, %v624, 0.0
        %705 = vadd.xlane.f32.xlu0 %v704
        %v706 = vpop.xlane.xlu0 %705
        %v707 = vsel %vm438, %v625, 0.0
        %708 = vadd.xlane.f32.xlu0 %v707
        %v709 = vpop.xlane.xlu0 %708
        %v710 = vsel %vm438, %v626, 0.0
        %711 = vadd.xlane.f32.xlu0 %v710
        %v712 = vpop.xlane.xlu0 %711
        %v713 = vsel %vm438, %v627, 0.0
        %714 = vadd.xlane.f32.xlu0 %v713
        %v715 = vpop.xlane.xlu0 %714
        %v716 = vsel %vm438, %v628, 0.0
        %717 = vadd.xlane.f32.xlu0 %v716
        %v718 = vpop.xlane.xlu0 %717
        %v719 = vsel %vm438, %v629, 0.0
        %720 = vadd.xlane.f32.xlu0 %v719
        %v721 = vpop.xlane.xlu0 %720
        %v722 = vsel %vm438, %v630, 0.0
        %723 = vadd.xlane.f32.xlu0 %v722
        %v724 = vpop.xlane.xlu0 %723
        %v725 = vsel %vm438, %v631, 0.0
        %726 = vadd.xlane.f32.xlu0 %v725
        %v727 = vpop.xlane.xlu0 %726
        %v728 = vmul.f32 %v634, %v535
        %v729 = vmul.f32 %v637, %v535
        %v730 = vmul.f32 %v640, %v535
        %v731 = vmul.f32 %v643, %v535
        %v732 = vmul.f32 %v646, %v535
        %v733 = vmul.f32 %v649, %v535
        %v734 = vmul.f32 %v652, %v535
        %v735 = vmul.f32 %v655, %v535
        %v736 = vmul.f32 %v658, %v535
        %v737 = vmul.f32 %v661, %v535
        %v738 = vmul.f32 %v664, %v535
        %v739 = vmul.f32 %v667, %v535
        %v740 = vmul.f32 %v670, %v535
        %v741 = vmul.f32 %v673, %v535
        %v742 = vmul.f32 %v676, %v535
        %v743 = vmul.f32 %v679, %v535
        %v744 = vmul.f32 %v682, %v535
        %v745 = vmul.f32 %v685, %v535
        %v746 = vmul.f32 %v688, %v535
        %v747 = vmul.f32 %v691, %v535
        %v748 = vmul.f32 %v694, %v535
        %v749 = vmul.f32 %v697, %v535
        %v750 = vmul.f32 %v700, %v535
        %v751 = vmul.f32 %v703, %v535
        %v752 = vmul.f32 %v706, %v535
        %v753 = vmul.f32 %v709, %v535
        %v754 = vmul.f32 %v712, %v535
        %v755 = vmul.f32 %v715, %v535
        %v756 = vmul.f32 %v718, %v535
        %v757 = vmul.f32 %v721, %v535
        %v758 = vmul.f32 %v724, %v535
        %v759 = vmul.f32 %v727, %v535
        %v760 = vadd.f32 %v728, 1e-05
        %v761 = vadd.f32 %v729, 1e-05
        %v762 = vadd.f32 %v730, 1e-05
        %v763 = vadd.f32 %v731, 1e-05
        %v764 = vadd.f32 %v732, 1e-05
        %v765 = vadd.f32 %v733, 1e-05
        %v766 = vadd.f32 %v734, 1e-05
        %v767 = vadd.f32 %v735, 1e-05
        %v768 = vadd.f32 %v736, 1e-05
        %v769 = vadd.f32 %v737, 1e-05
        %v770 = vadd.f32 %v738, 1e-05
        %v771 = vadd.f32 %v739, 1e-05
        %v772 = vadd.f32 %v740, 1e-05
        %v773 = vadd.f32 %v741, 1e-05
        %v774 = vadd.f32 %v742, 1e-05
        %v775 = vadd.f32 %v743, 1e-05
        %v776 = vadd.f32 %v744, 1e-05
        %v777 = vadd.f32 %v745, 1e-05
        %v778 = vadd.f32 %v746, 1e-05
        %v779 = vadd.f32 %v747, 1e-05
        %v780 = vadd.f32 %v748, 1e-05
        %v781 = vadd.f32 %v749, 1e-05
        %v782 = vadd.f32 %v750, 1e-05
        %v783 = vadd.f32 %v751, 1e-05
        %v784 = vadd.f32 %v752, 1e-05
        %v785 = vadd.f32 %v753, 1e-05
        %v786 = vadd.f32 %v754, 1e-05
        %v787 = vadd.f32 %v755, 1e-05
        %v788 = vadd.f32 %v756, 1e-05
        %v789 = vadd.f32 %v757, 1e-05
        %v790 = vadd.f32 %v758, 1e-05
        %v791 = vadd.f32 %v759, 1e-05
        %v792 = vrsqrt.pop %v760
        %v793 = vrsqrt.pop %v761
        %v794 = vrsqrt.pop %v762
        %v795 = vrsqrt.pop %v763
        %v796 = vrsqrt.pop %v764
        %v797 = vrsqrt.pop %v765
        %v798 = vrsqrt.pop %v766
        %v799 = vrsqrt.pop %v767
        %v800 = vrsqrt.pop %v768
        %v801 = vrsqrt.pop %v769
        %v802 = vrsqrt.pop %v770
        %v803 = vrsqrt.pop %v771
        %v804 = vrsqrt.pop %v772
        %v805 = vrsqrt.pop %v773
        %v806 = vrsqrt.pop %v774
        %v807 = vrsqrt.pop %v775
        %v808 = vrsqrt.pop %v776
        %v809 = vrsqrt.pop %v777
        %v810 = vrsqrt.pop %v778
        %v811 = vrsqrt.pop %v779
        %v812 = vrsqrt.pop %v780
        %v813 = vrsqrt.pop %v781
        %v814 = vrsqrt.pop %v782
        %v815 = vrsqrt.pop %v783
        %v816 = vrsqrt.pop %v784
        %v817 = vrsqrt.pop %v785
        %v818 = vrsqrt.pop %v786
        %v819 = vrsqrt.pop %v787
        %v820 = vrsqrt.pop %v788
        %v821 = vrsqrt.pop %v789
        %v822 = vrsqrt.pop %v790
        %v823 = vrsqrt.pop %v791
        %v824 = vmul.f32 %v568, %v792
        %v825 = vmul.f32 %v569, %v793
        %v826 = vmul.f32 %v570, %v794
        %v827 = vmul.f32 %v571, %v795
        %v828 = vmul.f32 %v572, %v796
        %v829 = vmul.f32 %v573, %v797
        %v830 = vmul.f32 %v574, %v798
        %v831 = vmul.f32 %v575, %v799
        %v832 = vmul.f32 %v576, %v800
        %v833 = vmul.f32 %v577, %v801
        %v834 = vmul.f32 %v578, %v802
        %v835 = vmul.f32 %v579, %v803
        %v836 = vmul.f32 %v580, %v804
        %v837 = vmul.f32 %v581, %v805
        %v838 = vmul.f32 %v582, %v806
        %v839 = vmul.f32 %v583, %v807
        %v840 = vmul.f32 %v584, %v808
        %v841 = vmul.f32 %v585, %v809
        %v842 = vmul.f32 %v586, %v810
        %v843 = vmul.f32 %v587, %v811
        %v844 = vmul.f32 %v588, %v812
        %v845 = vmul.f32 %v589, %v813
        %v846 = vmul.f32 %v590, %v814
        %v847 = vmul.f32 %v591, %v815
        %v848 = vmul.f32 %v592, %v816
        %v849 = vmul.f32 %v593, %v817
        %v850 = vmul.f32 %v594, %v818
        %v851 = vmul.f32 %v595, %v819
        %v852 = vmul.f32 %v596, %v820
        %v853 = vmul.f32 %v597, %v821
        %v854 = vmul.f32 %v598, %v822
        %v855 = vmul.f32 %v599, %v823
        %v856 = vld [vmem:[%s5] sm:$0x1]
        %v858 = vlaneseq
        %v859 = vshrl.u32 %v858, 7
        %v860 = vsub.s32 0, %v859
        %v861 = vrot.slane %v856, %v860
        %v863 = vmul.f32 %v824, %v861
        %v864 = vmul.f32 %v825, %v861
        %v865 = vmul.f32 %v826, %v861
        %v866 = vmul.f32 %v827, %v861
        %v867 = vmul.f32 %v828, %v861
        %v868 = vmul.f32 %v829, %v861
        %v869 = vmul.f32 %v830, %v861
        %v870 = vmul.f32 %v831, %v861
        %v871 = vmul.f32 %v832, %v861
        %v872 = vmul.f32 %v833, %v861
        %v873 = vmul.f32 %v834, %v861
        %v874 = vmul.f32 %v835, %v861
        %v875 = vmul.f32 %v836, %v861
        %v876 = vmul.f32 %v837, %v861
        %v877 = vmul.f32 %v838, %v861
        %v878 = vmul.f32 %v839, %v861
        %v879 = vmul.f32 %v840, %v861
        %v880 = vmul.f32 %v841, %v861
        %v881 = vmul.f32 %v842, %v861
        %v882 = vmul.f32 %v843, %v861
        %v883 = vmul.f32 %v844, %v861
        %v884 = vmul.f32 %v845, %v861
        %v885 = vmul.f32 %v846, %v861
        %v886 = vmul.f32 %v847, %v861
        %v887 = vmul.f32 %v848, %v861
        %v888 = vmul.f32 %v849, %v861
        %v889 = vmul.f32 %v850, %v861
        %v890 = vmul.f32 %v851, %v861
        %v891 = vmul.f32 %v852, %v861
        %v892 = vmul.f32 %v853, %v861
        %v893 = vmul.f32 %v854, %v861
        %v894 = vmul.f32 %v855, %v861
        %v895 = vld [vmem:[%s6] sm:$0x1]
        %v897 = vlaneseq
        %v898 = vshrl.u32 %v897, 7
        %v899 = vsub.s32 0, %v898
        %v900 = vrot.slane %v895, %v899
        %v902 = vadd.f32 %v863, %v900
        %v903 = vadd.f32 %v864, %v900
        %v904 = vadd.f32 %v865, %v900
        %v905 = vadd.f32 %v866, %v900
        %v906 = vadd.f32 %v867, %v900
        %v907 = vadd.f32 %v868, %v900
        %v908 = vadd.f32 %v869, %v900
        %v909 = vadd.f32 %v870, %v900
        %v910 = vadd.f32 %v871, %v900
        %v911 = vadd.f32 %v872, %v900
        %v912 = vadd.f32 %v873, %v900
        %v913 = vadd.f32 %v874, %v900
        %v914 = vadd.f32 %v875, %v900
        %v915 = vadd.f32 %v876, %v900
        %v916 = vadd.f32 %v877, %v900
        %v917 = vadd.f32 %v878, %v900
        %v918 = vadd.f32 %v879, %v900
        %v919 = vadd.f32 %v880, %v900
        %v920 = vadd.f32 %v881, %v900
        %v921 = vadd.f32 %v882, %v900
        %v922 = vadd.f32 %v883, %v900
        %v923 = vadd.f32 %v884, %v900
        %v924 = vadd.f32 %v885, %v900
        %v925 = vadd.f32 %v886, %v900
        %v926 = vadd.f32 %v887, %v900
        %v927 = vadd.f32 %v888, %v900
        %v928 = vadd.f32 %v889, %v900
        %v929 = vadd.f32 %v890, %v900
        %v930 = vadd.f32 %v891, %v900
        %v931 = vadd.f32 %v892, %v900
        %v932 = vadd.f32 %v893, %v900
        %v933 = vadd.f32 %v894, %v900
        %v934 = vpack.c.bf16 %v903, %v902
        %v935 = vpack.c.bf16 %v905, %v904
        %v936 = vpack.c.bf16 %v907, %v906
        %v937 = vpack.c.bf16 %v909, %v908
        %v938 = vpack.c.bf16 %v911, %v910
        %v939 = vpack.c.bf16 %v913, %v912
        %v940 = vpack.c.bf16 %v915, %v914
        %v941 = vpack.c.bf16 %v917, %v916
        %v942 = vpack.c.bf16 %v919, %v918
        %v943 = vpack.c.bf16 %v921, %v920
        %v944 = vpack.c.bf16 %v923, %v922
        %v945 = vpack.c.bf16 %v925, %v924
        %v946 = vpack.c.bf16 %v927, %v926
        %v947 = vpack.c.bf16 %v929, %v928
        %v948 = vpack.c.bf16 %v931, %v930
        %v949 = vpack.c.bf16 %v933, %v932
        %v950 = vld [vmem:[%s384] sm:$0xf]
        %v951 = vld [vmem:[%s384 + $0x4] sm:$0xf]
        %v952 = vld [vmem:[%s384 + $0x8] sm:$0xf]
        %v953 = vld [vmem:[%s384 + $0xc] sm:$0xf]
        %v954 = vld [vmem:[%s384 + $0x10] sm:$0xf]
        %v955 = vld [vmem:[%s384 + $0x14] sm:$0xf]
        %v956 = vld [vmem:[%s384 + $0x18] sm:$0xf]
        %v957 = vld [vmem:[%s384 + $0x1c] sm:$0xf]
        %v958 = vld [vmem:[%s387] sm:$0x1]
        %v960 = vlaneseq
        %v961 = vshrl.u32 %v960, 7
        %v962 = vsub.s32 0, %v961
        %v963 = vrot.slane %v958, %v962
        %v973 = vunpack.c.l.b16 %v950
        %v974 = vunpack.c.l.b16 %v951
        %v975 = vunpack.c.l.b16 %v952
        %v976 = vunpack.c.l.b16 %v953
        %v977 = vunpack.c.l.b16 %v954
        %v978 = vunpack.c.l.b16 %v955
        %v979 = vunpack.c.l.b16 %v956
        %v980 = vunpack.c.l.b16 %v957
        %v981 = vpack.c.b16 %v974, %v973
        %v982 = vpack.c.b16 %v976, %v975
        %v983 = vpack.c.b16 %v978, %v977
        %v984 = vpack.c.b16 %v980, %v979
        %v990 = vsel %vm438, %v934, 0
        %v993 = vsel %vm438, %v935, 0
        %v996 = vsel %vm438, %v936, 0
        %v999 = vsel %vm438, %v937, 0
        %v1002 = vsel %vm438, %v938, 0
        %v1005 = vsel %vm438, %v939, 0
        %v1008 = vsel %vm438, %v940, 0
        %v1011 = vsel %vm438, %v941, 0
        %v1014 = vsel %vm438, %v942, 0
        %v1017 = vsel %vm438, %v943, 0
        %v1020 = vsel %vm438, %v944, 0
        %v1023 = vsel %vm438, %v945, 0
        %v1026 = vsel %vm438, %v946, 0
        %v1029 = vsel %vm438, %v947, 0
        %v1032 = vsel %vm438, %v948, 0
        %v1035 = vsel %vm438, %v949, 0
        %1037 = vmatprep.subr.bf16.mxu0 0
        %1038 = vmatpush1.bf16.msra.mxu0 0
        %1039 = vmatprep.subr.bf16.mxu0 0
        %1040 = vmatpush1.bf16.msra.mxu0 0
        %1041 = vmatprep.subr.bf16.mxu0 0
        %1042 = vmatpush1.bf16.msra.mxu0 0
        %1043 = vmatprep.subr.bf16.mxu0 0
        %1044 = vmatpush1.bf16.msra.mxu0 0
        %1045 = vmatprep.subr.bf16.mxu0 0
        %1046 = vmatpush1.bf16.msra.mxu0 %v984
        %1047 = vmatprep.subr.bf16.mxu0 0
        %1048 = vmatpush1.bf16.msra.mxu0 %v983
        %1049 = vmatprep.subr.bf16.mxu0 0
        %1050 = vmatpush1.bf16.msra.mxu0 %v982
        %1051 = vmatprep.subr.bf16.mxu0 0
        %1052 = vmatpush1.bf16.msra.mxu0 %v981
        %1053 = vmatprep.subr.bf16.mxu0 0
        %1054 = vmatpush2.bf16.msra.mxu0 0
        %1055 = vmatprep.subr.bf16.mxu0 0
        %1056 = vmatpush2.bf16.msra.mxu0 0
        %1057 = vmatprep.subr.bf16.mxu0 0
        %1058 = vmatpush2.bf16.msra.mxu0 0
        %1059 = vmatprep.subr.bf16.mxu0 0
        %1060 = vmatpush2.bf16.msra.mxu0 0
        %1061 = vmatprep.subr.bf16.mxu0 0
        %1062 = vmatpush2.bf16.msra.mxu0 0
        %1063 = vmatprep.subr.bf16.mxu0 0
        %1064 = vmatpush2.bf16.msra.mxu0 0
        %1065 = vmatprep.subr.bf16.mxu0 0
        %1066 = vmatpush2.bf16.msra.mxu0 0
        %1067 = vmatprep.subr.bf16.mxu0 0
        %1068 = vmatpush2.bf16.msra.mxu0 0
        %1069 = vmatprep.mubr.bf16.mxu0 0
        %1070 = vmatmul.mubr.bf16.gmra.mxu0 %v990
        %v1071 = vpop.f32.mrf.mxu0
        %v1072 = vadd.f32 %v963, %v1071
        %v1073 = vpop.f32.mrf.mxu0
        %v1074 = vpop.f32.mrf.mxu0
        %v1075 = vadd.f32 %v963, %v1074
        %v1076 = vpop.f32.mrf.mxu0
        %1077 = vmatprep.mubr.bf16.mxu0 0
        %1078 = vmatmul.mubr.bf16.gmra.mxu0 %v993
        %v1079 = vpop.f32.mrf.mxu0
        %v1080 = vadd.f32 %v963, %v1079
        %v1081 = vpop.f32.mrf.mxu0
        %v1082 = vpop.f32.mrf.mxu0
        %v1083 = vadd.f32 %v963, %v1082
        %v1084 = vpop.f32.mrf.mxu0
        %1085 = vmatprep.mubr.bf16.mxu0 0
        %1086 = vmatmul.mubr.bf16.gmra.mxu0 %v996
        %v1087 = vpop.f32.mrf.mxu0
        %v1088 = vadd.f32 %v963, %v1087
        %v1089 = vpop.f32.mrf.mxu0
        %v1090 = vpop.f32.mrf.mxu0
        %v1091 = vadd.f32 %v963, %v1090
        %v1092 = vpop.f32.mrf.mxu0
        %1093 = vmatprep.mubr.bf16.mxu0 0
        %1094 = vmatmul.mubr.bf16.gmra.mxu0 %v999
        %v1095 = vpop.f32.mrf.mxu0
        %v1096 = vadd.f32 %v963, %v1095
        %v1097 = vpop.f32.mrf.mxu0
        %v1098 = vpop.f32.mrf.mxu0
        %v1099 = vadd.f32 %v963, %v1098
        %v1100 = vpop.f32.mrf.mxu0
        %1101 = vmatprep.mubr.bf16.mxu0 0
        %1102 = vmatmul.mubr.bf16.gmra.mxu0 %v1002
        %v1103 = vpop.f32.mrf.mxu0
        %v1104 = vadd.f32 %v963, %v1103
        %v1105 = vpop.f32.mrf.mxu0
        %v1106 = vpop.f32.mrf.mxu0
        %v1107 = vadd.f32 %v963, %v1106
        %v1108 = vpop.f32.mrf.mxu0
        %1109 = vmatprep.mubr.bf16.mxu0 0
        %1110 = vmatmul.mubr.bf16.gmra.mxu0 %v1005
        %v1111 = vpop.f32.mrf.mxu0
        %v1112 = vadd.f32 %v963, %v1111
        %v1113 = vpop.f32.mrf.mxu0
        %v1114 = vpop.f32.mrf.mxu0
        %v1115 = vadd.f32 %v963, %v1114
        %v1116 = vpop.f32.mrf.mxu0
        %1117 = vmatprep.mubr.bf16.mxu0 0
        %1118 = vmatmul.mubr.bf16.gmra.mxu0 %v1008
        %v1119 = vpop.f32.mrf.mxu0
        %v1120 = vadd.f32 %v963, %v1119
        %v1121 = vpop.f32.mrf.mxu0
        %v1122 = vpop.f32.mrf.mxu0
        %v1123 = vadd.f32 %v963, %v1122
        %v1124 = vpop.f32.mrf.mxu0
        %1125 = vmatprep.mubr.bf16.mxu0 0
        %1126 = vmatmul.mubr.bf16.gmra.mxu0 %v1011
        %v1127 = vpop.f32.mrf.mxu0
        %v1128 = vadd.f32 %v963, %v1127
        %v1129 = vpop.f32.mrf.mxu0
        %v1130 = vpop.f32.mrf.mxu0
        %v1131 = vadd.f32 %v963, %v1130
        %v1132 = vpop.f32.mrf.mxu0
        %1133 = vmatprep.mubr.bf16.mxu0 0
        %1134 = vmatmul.mubr.bf16.gmra.mxu0 %v1014
        %v1135 = vpop.f32.mrf.mxu0
        %v1136 = vadd.f32 %v963, %v1135
        %v1137 = vpop.f32.mrf.mxu0
        %v1138 = vpop.f32.mrf.mxu0
        %v1139 = vadd.f32 %v963, %v1138
        %v1140 = vpop.f32.mrf.mxu0
        %1141 = vmatprep.mubr.bf16.mxu0 0
        %1142 = vmatmul.mubr.bf16.gmra.mxu0 %v1017
        %v1143 = vpop.f32.mrf.mxu0
        %v1144 = vadd.f32 %v963, %v1143
        %v1145 = vpop.f32.mrf.mxu0
        %v1146 = vpop.f32.mrf.mxu0
        %v1147 = vadd.f32 %v963, %v1146
        %v1148 = vpop.f32.mrf.mxu0
        %1149 = vmatprep.mubr.bf16.mxu0 0
        %1150 = vmatmul.mubr.bf16.gmra.mxu0 %v1020
        %v1151 = vpop.f32.mrf.mxu0
        %v1152 = vadd.f32 %v963, %v1151
        %v1153 = vpop.f32.mrf.mxu0
        %v1154 = vpop.f32.mrf.mxu0
        %v1155 = vadd.f32 %v963, %v1154
        %v1156 = vpop.f32.mrf.mxu0
        %1157 = vmatprep.mubr.bf16.mxu0 0
        %1158 = vmatmul.mubr.bf16.gmra.mxu0 %v1023
        %v1159 = vpop.f32.mrf.mxu0
        %v1160 = vadd.f32 %v963, %v1159
        %v1161 = vpop.f32.mrf.mxu0
        %v1162 = vpop.f32.mrf.mxu0
        %v1163 = vadd.f32 %v963, %v1162
        %v1164 = vpop.f32.mrf.mxu0
        %1165 = vmatprep.mubr.bf16.mxu0 0
        %1166 = vmatmul.mubr.bf16.gmra.mxu0 %v1026
        %v1167 = vpop.f32.mrf.mxu0
        %v1168 = vadd.f32 %v963, %v1167
        %v1169 = vpop.f32.mrf.mxu0
        %v1170 = vpop.f32.mrf.mxu0
        %v1171 = vadd.f32 %v963, %v1170
        %v1172 = vpop.f32.mrf.mxu0
        %1173 = vmatprep.mubr.bf16.mxu0 0
        %1174 = vmatmul.mubr.bf16.gmra.mxu0 %v1029
        %v1175 = vpop.f32.mrf.mxu0
        %v1176 = vadd.f32 %v963, %v1175
        %v1177 = vpop.f32.mrf.mxu0
        %v1178 = vpop.f32.mrf.mxu0
        %v1179 = vadd.f32 %v963, %v1178
        %v1180 = vpop.f32.mrf.mxu0
        %1181 = vmatprep.mubr.bf16.mxu0 0
        %1182 = vmatmul.mubr.bf16.gmra.mxu0 %v1032
        %v1183 = vpop.f32.mrf.mxu0
        %v1184 = vadd.f32 %v963, %v1183
        %v1185 = vpop.f32.mrf.mxu0
        %v1186 = vpop.f32.mrf.mxu0
        %v1187 = vadd.f32 %v963, %v1186
        %v1188 = vpop.f32.mrf.mxu0
        %1189 = vmatprep.mubr.bf16.mxu0 0
        %1190 = vmatmul.mubr.bf16.gmra.mxu0 %v1035
        %v1191 = vpop.f32.mrf.mxu0
        %v1192 = vadd.f32 %v963, %v1191
        %v1193 = vpop.f32.mrf.mxu0
        %v1194 = vpop.f32.mrf.mxu0
        %v1195 = vadd.f32 %v963, %v1194
        %v1196 = vpop.f32.mrf.mxu0
        %1197 = vdwg.mxu0
        %v1198 = vpack.c.bf16 %v1075, %v1072
        %v1199 = vpack.c.bf16 %v1083, %v1080
        %v1200 = vpack.c.bf16 %v1091, %v1088
        %v1201 = vpack.c.bf16 %v1099, %v1096
        %v1202 = vpack.c.bf16 %v1107, %v1104
        %v1203 = vpack.c.bf16 %v1115, %v1112
        %v1204 = vpack.c.bf16 %v1123, %v1120
        %v1205 = vpack.c.bf16 %v1131, %v1128
        %v1206 = vpack.c.bf16 %v1139, %v1136
        %v1207 = vpack.c.bf16 %v1147, %v1144
        %v1208 = vpack.c.bf16 %v1155, %v1152
        %v1209 = vpack.c.bf16 %v1163, %v1160
        %v1210 = vpack.c.bf16 %v1171, %v1168
        %v1211 = vpack.c.bf16 %v1179, %v1176
        %v1212 = vpack.c.bf16 %v1187, %v1184
        %v1213 = vpack.c.bf16 %v1195, %v1192
        %v1230 = vunpack.c.l.b16 %v1198
        %v1231 = vunpack.c.h.b16 %v1198
        %v1232 = vunpack.c.l.b16 %v1199
        %v1233 = vunpack.c.h.b16 %v1199
        %v1234 = vunpack.c.l.b16 %v1200
        %v1235 = vunpack.c.h.b16 %v1200
        %v1236 = vunpack.c.l.b16 %v1201
        %v1237 = vunpack.c.h.b16 %v1201
        %v1238 = vunpack.c.l.b16 %v1202
        %v1239 = vunpack.c.h.b16 %v1202
        %v1240 = vunpack.c.l.b16 %v1203
        %v1241 = vunpack.c.h.b16 %v1203
        %v1242 = vunpack.c.l.b16 %v1204
        %v1243 = vunpack.c.h.b16 %v1204
        %v1244 = vunpack.c.l.b16 %v1205
        %v1245 = vunpack.c.h.b16 %v1205
        %v1246 = vunpack.c.l.b16 %v1206
        %v1247 = vunpack.c.h.b16 %v1206
        %v1248 = vunpack.c.l.b16 %v1207
        %v1249 = vunpack.c.h.b16 %v1207
        %v1250 = vunpack.c.l.b16 %v1208
        %v1251 = vunpack.c.h.b16 %v1208
        %v1252 = vunpack.c.l.b16 %v1209
        %v1253 = vunpack.c.h.b16 %v1209
        %v1254 = vunpack.c.l.b16 %v1210
        %v1255 = vunpack.c.h.b16 %v1210
        %v1256 = vunpack.c.l.b16 %v1211
        %v1257 = vunpack.c.h.b16 %v1211
        %v1258 = vunpack.c.l.b16 %v1212
        %v1259 = vunpack.c.h.b16 %v1212
        %v1260 = vunpack.c.l.b16 %v1213
        %v1261 = vunpack.c.h.b16 %v1213
        %v1262 = vpack.c.b16 %v1230, %v1230
        %v1263 = vpack.c.b16 %v1231, %v1231
        %v1264 = vpack.c.b16 %v1232, %v1232
        %v1265 = vpack.c.b16 %v1233, %v1233
        %v1266 = vpack.c.b16 %v1234, %v1234
        %v1267 = vpack.c.b16 %v1235, %v1235
        %v1268 = vpack.c.b16 %v1236, %v1236
        %v1269 = vpack.c.b16 %v1237, %v1237
        %v1270 = vpack.c.b16 %v1238, %v1238
        %v1271 = vpack.c.b16 %v1239, %v1239
        %v1272 = vpack.c.b16 %v1240, %v1240
        %v1273 = vpack.c.b16 %v1241, %v1241
        %v1274 = vpack.c.b16 %v1242, %v1242
        %v1275 = vpack.c.b16 %v1243, %v1243
        %v1276 = vpack.c.b16 %v1244, %v1244
        %v1277 = vpack.c.b16 %v1245, %v1245
        %v1278 = vpack.c.b16 %v1246, %v1246
        %v1279 = vpack.c.b16 %v1247, %v1247
        %v1280 = vpack.c.b16 %v1248, %v1248
        %v1281 = vpack.c.b16 %v1249, %v1249
        %v1282 = vpack.c.b16 %v1250, %v1250
        %v1283 = vpack.c.b16 %v1251, %v1251
        %v1284 = vpack.c.b16 %v1252, %v1252
        %v1285 = vpack.c.b16 %v1253, %v1253
        %v1286 = vpack.c.b16 %v1254, %v1254
        %v1287 = vpack.c.b16 %v1255, %v1255
        %v1288 = vpack.c.b16 %v1256, %v1256
        %v1289 = vpack.c.b16 %v1257, %v1257
        %v1290 = vpack.c.b16 %v1258, %v1258
        %v1291 = vpack.c.b16 %v1259, %v1259
        %v1292 = vpack.c.b16 %v1260, %v1260
        %v1293 = vpack.c.b16 %v1261, %v1261
        %vm1326 = vcmask 519168
        %1327 = vst.msk [vmem:[%s402] sm:$0xf] %vm1326, %v1262
        %1328 = vst.msk [vmem:[%s402 + $0x4] sm:$0xf] %vm1326, %v1263
        %1329 = vst.msk [vmem:[%s402 + $0x8] sm:$0xf] %vm1326, %v1264
        %1330 = vst.msk [vmem:[%s402 + $0xc] sm:$0xf] %vm1326, %v1265
        %1331 = vst.msk [vmem:[%s402 + $0x10] sm:$0xf] %vm1326, %v1266
        %1332 = vst.msk [vmem:[%s402 + $0x14] sm:$0xf] %vm1326, %v1267
        %1333 = vst.msk [vmem:[%s402 + $0x18] sm:$0xf] %vm1326, %v1268
        %1334 = vst.msk [vmem:[%s402 + $0x1c] sm:$0xf] %vm1326, %v1269
        %1335 = vst.msk [vmem:[%s402 + $0x20] sm:$0xf] %vm1326, %v1270
        %1336 = vst.msk [vmem:[%s402 + $0x24] sm:$0xf] %vm1326, %v1271
        %1337 = vst.msk [vmem:[%s402 + $0x28] sm:$0xf] %vm1326, %v1272
        %1338 = vst.msk [vmem:[%s402 + $0x2c] sm:$0xf] %vm1326, %v1273
        %1339 = vst.msk [vmem:[%s402 + $0x30] sm:$0xf] %vm1326, %v1274
        %1340 = vst.msk [vmem:[%s402 + $0x34] sm:$0xf] %vm1326, %v1275
        %1341 = vst.msk [vmem:[%s402 + $0x38] sm:$0xf] %vm1326, %v1276
        %1342 = vst.msk [vmem:[%s402 + $0x3c] sm:$0xf] %vm1326, %v1277
        %1343 = vst.msk [vmem:[%s402 + $0x40] sm:$0xf] %vm1326, %v1278
        %1344 = vst.msk [vmem:[%s402 + $0x44] sm:$0xf] %vm1326, %v1279
        %1345 = vst.msk [vmem:[%s402 + $0x48] sm:$0xf] %vm1326, %v1280
        %1346 = vst.msk [vmem:[%s402 + $0x4c] sm:$0xf] %vm1326, %v1281
        %1347 = vst.msk [vmem:[%s402 + $0x50] sm:$0xf] %vm1326, %v1282
        %1348 = vst.msk [vmem:[%s402 + $0x54] sm:$0xf] %vm1326, %v1283
        %1349 = vst.msk [vmem:[%s402 + $0x58] sm:$0xf] %vm1326, %v1284
        %1350 = vst.msk [vmem:[%s402 + $0x5c] sm:$0xf] %vm1326, %v1285
        %1351 = vst.msk [vmem:[%s402 + $0x60] sm:$0xf] %vm1326, %v1286
        %1352 = vst.msk [vmem:[%s402 + $0x64] sm:$0xf] %vm1326, %v1287
        %1353 = vst.msk [vmem:[%s402 + $0x68] sm:$0xf] %vm1326, %v1288
        %1354 = vst.msk [vmem:[%s402 + $0x6c] sm:$0xf] %vm1326, %v1289
        %1355 = vst.msk [vmem:[%s402 + $0x70] sm:$0xf] %vm1326, %v1290
        %1356 = vst.msk [vmem:[%s402 + $0x74] sm:$0xf] %vm1326, %v1291
        %1357 = vst.msk [vmem:[%s402 + $0x78] sm:$0xf] %vm1326, %v1292
        %1358 = vst.msk [vmem:[%s402 + $0x7c] sm:$0xf] %vm1326, %v1293
        %v1359 = vld [vmem:[%s391] sm:$0xf]
        %v1360 = vld [vmem:[%s391 + $0x4] sm:$0xf]
        %v1361 = vld [vmem:[%s391 + $0x8] sm:$0xf]
        %v1362 = vld [vmem:[%s391 + $0xc] sm:$0xf]
        %v1363 = vld [vmem:[%s391 + $0x10] sm:$0xf]
        %v1364 = vld [vmem:[%s391 + $0x14] sm:$0xf]
        %v1365 = vld [vmem:[%s391 + $0x18] sm:$0xf]
        %v1366 = vld [vmem:[%s391 + $0x1c] sm:$0xf]
        %v1367 = vld [vmem:[%s394] sm:$0x1]
        %v1369 = vlaneseq
        %v1370 = vshrl.u32 %v1369, 7
        %v1371 = vsub.s32 0, %v1370
        %v1372 = vrot.slane %v1367, %v1371
        %v1382 = vunpack.c.l.b16 %v1359
        %v1383 = vunpack.c.l.b16 %v1360
        %v1384 = vunpack.c.l.b16 %v1361
        %v1385 = vunpack.c.l.b16 %v1362
        %v1386 = vunpack.c.l.b16 %v1363
        %v1387 = vunpack.c.l.b16 %v1364
        %v1388 = vunpack.c.l.b16 %v1365
        %v1389 = vunpack.c.l.b16 %v1366
        %v1390 = vpack.c.b16 %v1383, %v1382
        %v1391 = vpack.c.b16 %v1385, %v1384
        %v1392 = vpack.c.b16 %v1387, %v1386
        %v1393 = vpack.c.b16 %v1389, %v1388
        %1398 = vmatprep.subr.bf16.mxu0 0
        %1399 = vmatpush1.bf16.msra.mxu0 0
        %1400 = vmatprep.subr.bf16.mxu0 0
        %1401 = vmatpush1.bf16.msra.mxu0 0
        %1402 = vmatprep.subr.bf16.mxu0 0
        %1403 = vmatpush1.bf16.msra.mxu0 0
        %1404 = vmatprep.subr.bf16.mxu0 0
        %1405 = vmatpush1.bf16.msra.mxu0 0
        %1406 = vmatprep.subr.bf16.mxu0 0
        %1407 = vmatpush1.bf16.msra.mxu0 %v1393
        %1408 = vmatprep.subr.bf16.mxu0 0
        %1409 = vmatpush1.bf16.msra.mxu0 %v1392
        %1410 = vmatprep.subr.bf16.mxu0 0
        %1411 = vmatpush1.bf16.msra.mxu0 %v1391
        %1412 = vmatprep.subr.bf16.mxu0 0
        %1413 = vmatpush1.bf16.msra.mxu0 %v1390
        %1414 = vmatprep.subr.bf16.mxu0 0
        %1415 = vmatpush2.bf16.msra.mxu0 0
        %1416 = vmatprep.subr.bf16.mxu0 0
        %1417 = vmatpush2.bf16.msra.mxu0 0
        %1418 = vmatprep.subr.bf16.mxu0 0
        %1419 = vmatpush2.bf16.msra.mxu0 0
        %1420 = vmatprep.subr.bf16.mxu0 0
        %1421 = vmatpush2.bf16.msra.mxu0 0
        %1422 = vmatprep.subr.bf16.mxu0 0
        %1423 = vmatpush2.bf16.msra.mxu0 0
        %1424 = vmatprep.subr.bf16.mxu0 0
        %1425 = vmatpush2.bf16.msra.mxu0 0
        %1426 = vmatprep.subr.bf16.mxu0 0
        %1427 = vmatpush2.bf16.msra.mxu0 0
        %1428 = vmatprep.subr.bf16.mxu0 0
        %1429 = vmatpush2.bf16.msra.mxu0 0
        %1430 = vmatprep.mubr.bf16.mxu0 0
        %1431 = vmatmul.mubr.bf16.gmra.mxu0 %v990
        %v1432 = vpop.f32.mrf.mxu0
        %v1433 = vadd.f32 %v1372, %v1432
        %v1434 = vpop.f32.mrf.mxu0
        %v1435 = vpop.f32.mrf.mxu0
        %v1436 = vadd.f32 %v1372, %v1435
        %v1437 = vpop.f32.mrf.mxu0
        %1438 = vmatprep.mubr.bf16.mxu0 0
        %1439 = vmatmul.mubr.bf16.gmra.mxu0 %v993
        %v1440 = vpop.f32.mrf.mxu0
        %v1441 = vadd.f32 %v1372, %v1440
        %v1442 = vpop.f32.mrf.mxu0
        %v1443 = vpop.f32.mrf.mxu0
        %v1444 = vadd.f32 %v1372, %v1443
        %v1445 = vpop.f32.mrf.mxu0
        %1446 = vmatprep.mubr.bf16.mxu0 0
        %1447 = vmatmul.mubr.bf16.gmra.mxu0 %v996
        %v1448 = vpop.f32.mrf.mxu0
        %v1449 = vadd.f32 %v1372, %v1448
        %v1450 = vpop.f32.mrf.mxu0
        %v1451 = vpop.f32.mrf.mxu0
        %v1452 = vadd.f32 %v1372, %v1451
        %v1453 = vpop.f32.mrf.mxu0
        %1454 = vmatprep.mubr.bf16.mxu0 0
        %1455 = vmatmul.mubr.bf16.gmra.mxu0 %v999
        %v1456 = vpop.f32.mrf.mxu0
        %v1457 = vadd.f32 %v1372, %v1456
        %v1458 = vpop.f32.mrf.mxu0
        %v1459 = vpop.f32.mrf.mxu0
        %v1460 = vadd.f32 %v1372, %v1459
        %v1461 = vpop.f32.mrf.mxu0
        %1462 = vmatprep.mubr.bf16.mxu0 0
        %1463 = vmatmul.mubr.bf16.gmra.mxu0 %v1002
        %v1464 = vpop.f32.mrf.mxu0
        %v1465 = vadd.f32 %v1372, %v1464
        %v1466 = vpop.f32.mrf.mxu0
        %v1467 = vpop.f32.mrf.mxu0
        %v1468 = vadd.f32 %v1372, %v1467
        %v1469 = vpop.f32.mrf.mxu0
        %1470 = vmatprep.mubr.bf16.mxu0 0
        %1471 = vmatmul.mubr.bf16.gmra.mxu0 %v1005
        %v1472 = vpop.f32.mrf.mxu0
        %v1473 = vadd.f32 %v1372, %v1472
        %v1474 = vpop.f32.mrf.mxu0
        %v1475 = vpop.f32.mrf.mxu0
        %v1476 = vadd.f32 %v1372, %v1475
        %v1477 = vpop.f32.mrf.mxu0
        %1478 = vmatprep.mubr.bf16.mxu0 0
        %1479 = vmatmul.mubr.bf16.gmra.mxu0 %v1008
        %v1480 = vpop.f32.mrf.mxu0
        %v1481 = vadd.f32 %v1372, %v1480
        %v1482 = vpop.f32.mrf.mxu0
        %v1483 = vpop.f32.mrf.mxu0
        %v1484 = vadd.f32 %v1372, %v1483
        %v1485 = vpop.f32.mrf.mxu0
        %1486 = vmatprep.mubr.bf16.mxu0 0
        %1487 = vmatmul.mubr.bf16.gmra.mxu0 %v1011
        %v1488 = vpop.f32.mrf.mxu0
        %v1489 = vadd.f32 %v1372, %v1488
        %v1490 = vpop.f32.mrf.mxu0
        %v1491 = vpop.f32.mrf.mxu0
        %v1492 = vadd.f32 %v1372, %v1491
        %v1493 = vpop.f32.mrf.mxu0
        %1494 = vmatprep.mubr.bf16.mxu0 0
        %1495 = vmatmul.mubr.bf16.gmra.mxu0 %v1014
        %v1496 = vpop.f32.mrf.mxu0
        %v1497 = vadd.f32 %v1372, %v1496
        %v1498 = vpop.f32.mrf.mxu0
        %v1499 = vpop.f32.mrf.mxu0
        %v1500 = vadd.f32 %v1372, %v1499
        %v1501 = vpop.f32.mrf.mxu0
        %1502 = vmatprep.mubr.bf16.mxu0 0
        %1503 = vmatmul.mubr.bf16.gmra.mxu0 %v1017
        %v1504 = vpop.f32.mrf.mxu0
        %v1505 = vadd.f32 %v1372, %v1504
        %v1506 = vpop.f32.mrf.mxu0
        %v1507 = vpop.f32.mrf.mxu0
        %v1508 = vadd.f32 %v1372, %v1507
        %v1509 = vpop.f32.mrf.mxu0
        %1510 = vmatprep.mubr.bf16.mxu0 0
        %1511 = vmatmul.mubr.bf16.gmra.mxu0 %v1020
        %v1512 = vpop.f32.mrf.mxu0
        %v1513 = vadd.f32 %v1372, %v1512
        %v1514 = vpop.f32.mrf.mxu0
        %v1515 = vpop.f32.mrf.mxu0
        %v1516 = vadd.f32 %v1372, %v1515
        %v1517 = vpop.f32.mrf.mxu0
        %1518 = vmatprep.mubr.bf16.mxu0 0
        %1519 = vmatmul.mubr.bf16.gmra.mxu0 %v1023
        %v1520 = vpop.f32.mrf.mxu0
        %v1521 = vadd.f32 %v1372, %v1520
        %v1522 = vpop.f32.mrf.mxu0
        %v1523 = vpop.f32.mrf.mxu0
        %v1524 = vadd.f32 %v1372, %v1523
        %v1525 = vpop.f32.mrf.mxu0
        %1526 = vmatprep.mubr.bf16.mxu0 0
        %1527 = vmatmul.mubr.bf16.gmra.mxu0 %v1026
        %v1528 = vpop.f32.mrf.mxu0
        %v1529 = vadd.f32 %v1372, %v1528
        %v1530 = vpop.f32.mrf.mxu0
        %v1531 = vpop.f32.mrf.mxu0
        %v1532 = vadd.f32 %v1372, %v1531
        %v1533 = vpop.f32.mrf.mxu0
        %1534 = vmatprep.mubr.bf16.mxu0 0
        %1535 = vmatmul.mubr.bf16.gmra.mxu0 %v1029
        %v1536 = vpop.f32.mrf.mxu0
        %v1537 = vadd.f32 %v1372, %v1536
        %v1538 = vpop.f32.mrf.mxu0
        %v1539 = vpop.f32.mrf.mxu0
        %v1540 = vadd.f32 %v1372, %v1539
        %v1541 = vpop.f32.mrf.mxu0
        %1542 = vmatprep.mubr.bf16.mxu0 0
        %1543 = vmatmul.mubr.bf16.gmra.mxu0 %v1032
        %v1544 = vpop.f32.mrf.mxu0
        %v1545 = vadd.f32 %v1372, %v1544
        %v1546 = vpop.f32.mrf.mxu0
        %v1547 = vpop.f32.mrf.mxu0
        %v1548 = vadd.f32 %v1372, %v1547
        %v1549 = vpop.f32.mrf.mxu0
        %1550 = vmatprep.mubr.bf16.mxu0 0
        %1551 = vmatmul.mubr.bf16.gmra.mxu0 %v1035
        %v1552 = vpop.f32.mrf.mxu0
        %v1553 = vadd.f32 %v1372, %v1552
        %v1554 = vpop.f32.mrf.mxu0
        %v1555 = vpop.f32.mrf.mxu0
        %v1556 = vadd.f32 %v1372, %v1555
        %v1557 = vpop.f32.mrf.mxu0
        %1558 = vdwg.mxu0
        %v1559 = vpack.c.bf16 %v1436, %v1433
        %v1560 = vpack.c.bf16 %v1444, %v1441
        %v1561 = vpack.c.bf16 %v1452, %v1449
        %v1562 = vpack.c.bf16 %v1460, %v1457
        %v1563 = vpack.c.bf16 %v1468, %v1465
        %v1564 = vpack.c.bf16 %v1476, %v1473
        %v1565 = vpack.c.bf16 %v1484, %v1481
        %v1566 = vpack.c.bf16 %v1492, %v1489
        %v1567 = vpack.c.bf16 %v1500, %v1497
        %v1568 = vpack.c.bf16 %v1508, %v1505
        %v1569 = vpack.c.bf16 %v1516, %v1513
        %v1570 = vpack.c.bf16 %v1524, %v1521
        %v1571 = vpack.c.bf16 %v1532, %v1529
        %v1572 = vpack.c.bf16 %v1540, %v1537
        %v1573 = vpack.c.bf16 %v1548, %v1545
        %v1574 = vpack.c.bf16 %v1556, %v1553
        %v1591 = vunpack.c.l.b16 %v1559
        %v1592 = vunpack.c.h.b16 %v1559
        %v1593 = vunpack.c.l.b16 %v1560
        %v1594 = vunpack.c.h.b16 %v1560
        %v1595 = vunpack.c.l.b16 %v1561
        %v1596 = vunpack.c.h.b16 %v1561
        %v1597 = vunpack.c.l.b16 %v1562
        %v1598 = vunpack.c.h.b16 %v1562
        %v1599 = vunpack.c.l.b16 %v1563
        %v1600 = vunpack.c.h.b16 %v1563
        %v1601 = vunpack.c.l.b16 %v1564
        %v1602 = vunpack.c.h.b16 %v1564
        %v1603 = vunpack.c.l.b16 %v1565
        %v1604 = vunpack.c.h.b16 %v1565
        %v1605 = vunpack.c.l.b16 %v1566
        %v1606 = vunpack.c.h.b16 %v1566
        %v1607 = vunpack.c.l.b16 %v1567
        %v1608 = vunpack.c.h.b16 %v1567
        %v1609 = vunpack.c.l.b16 %v1568
        %v1610 = vunpack.c.h.b16 %v1568
        %v1611 = vunpack.c.l.b16 %v1569
        %v1612 = vunpack.c.h.b16 %v1569
        %v1613 = vunpack.c.l.b16 %v1570
        %v1614 = vunpack.c.h.b16 %v1570
        %v1615 = vunpack.c.l.b16 %v1571
        %v1616 = vunpack.c.h.b16 %v1571
        %v1617 = vunpack.c.l.b16 %v1572
        %v1618 = vunpack.c.h.b16 %v1572
        %v1619 = vunpack.c.l.b16 %v1573
        %v1620 = vunpack.c.h.b16 %v1573
        %v1621 = vunpack.c.l.b16 %v1574
        %v1622 = vunpack.c.h.b16 %v1574
        %v1623 = vpack.c.b16 %v1591, %v1591
        %v1624 = vpack.c.b16 %v1592, %v1592
        %v1625 = vpack.c.b16 %v1593, %v1593
        %v1626 = vpack.c.b16 %v1594, %v1594
        %v1627 = vpack.c.b16 %v1595, %v1595
        %v1628 = vpack.c.b16 %v1596, %v1596
        %v1629 = vpack.c.b16 %v1597, %v1597
        %v1630 = vpack.c.b16 %v1598, %v1598
        %v1631 = vpack.c.b16 %v1599, %v1599
        %v1632 = vpack.c.b16 %v1600, %v1600
        %v1633 = vpack.c.b16 %v1601, %v1601
        %v1634 = vpack.c.b16 %v1602, %v1602
        %v1635 = vpack.c.b16 %v1603, %v1603
        %v1636 = vpack.c.b16 %v1604, %v1604
        %v1637 = vpack.c.b16 %v1605, %v1605
        %v1638 = vpack.c.b16 %v1606, %v1606
        %v1639 = vpack.c.b16 %v1607, %v1607
        %v1640 = vpack.c.b16 %v1608, %v1608
        %v1641 = vpack.c.b16 %v1609, %v1609
        %v1642 = vpack.c.b16 %v1610, %v1610
        %v1643 = vpack.c.b16 %v1611, %v1611
        %v1644 = vpack.c.b16 %v1612, %v1612
        %v1645 = vpack.c.b16 %v1613, %v1613
        %v1646 = vpack.c.b16 %v1614, %v1614
        %v1647 = vpack.c.b16 %v1615, %v1615
        %v1648 = vpack.c.b16 %v1616, %v1616
        %v1649 = vpack.c.b16 %v1617, %v1617
        %v1650 = vpack.c.b16 %v1618, %v1618
        %v1651 = vpack.c.b16 %v1619, %v1619
        %v1652 = vpack.c.b16 %v1620, %v1620
        %v1653 = vpack.c.b16 %v1621, %v1621
        %v1654 = vpack.c.b16 %v1622, %v1622
        %1687 = vst [vmem:[%s374] sm:$0xf] %v1623
        %1688 = vst [vmem:[%s374 + $0x4] sm:$0xf] %v1624
        %1689 = vst [vmem:[%s374 + $0x8] sm:$0xf] %v1625
        %1690 = vst [vmem:[%s374 + $0xc] sm:$0xf] %v1626
        %1691 = vst [vmem:[%s374 + $0x10] sm:$0xf] %v1627
        %1692 = vst [vmem:[%s374 + $0x14] sm:$0xf] %v1628
        %1693 = vst [vmem:[%s374 + $0x18] sm:$0xf] %v1629
        %1694 = vst [vmem:[%s374 + $0x1c] sm:$0xf] %v1630
        %1695 = vst [vmem:[%s374 + $0x20] sm:$0xf] %v1631
        %1696 = vst [vmem:[%s374 + $0x24] sm:$0xf] %v1632
        %1697 = vst [vmem:[%s374 + $0x28] sm:$0xf] %v1633
        %1698 = vst [vmem:[%s374 + $0x2c] sm:$0xf] %v1634
        %1699 = vst [vmem:[%s374 + $0x30] sm:$0xf] %v1635
        %1700 = vst [vmem:[%s374 + $0x34] sm:$0xf] %v1636
        %1701 = vst [vmem:[%s374 + $0x38] sm:$0xf] %v1637
        %1702 = vst [vmem:[%s374 + $0x3c] sm:$0xf] %v1638
        %1703 = vst [vmem:[%s374 + $0x40] sm:$0xf] %v1639
        %1704 = vst [vmem:[%s374 + $0x44] sm:$0xf] %v1640
        %1705 = vst [vmem:[%s374 + $0x48] sm:$0xf] %v1641
        %1706 = vst [vmem:[%s374 + $0x4c] sm:$0xf] %v1642
        %1707 = vst [vmem:[%s374 + $0x50] sm:$0xf] %v1643
        %1708 = vst [vmem:[%s374 + $0x54] sm:$0xf] %v1644
        %1709 = vst [vmem:[%s374 + $0x58] sm:$0xf] %v1645
        %1710 = vst [vmem:[%s374 + $0x5c] sm:$0xf] %v1646
        %1711 = vst [vmem:[%s374 + $0x60] sm:$0xf] %v1647
        %1712 = vst [vmem:[%s374 + $0x64] sm:$0xf] %v1648
        %1713 = vst [vmem:[%s374 + $0x68] sm:$0xf] %v1649
        %1714 = vst [vmem:[%s374 + $0x6c] sm:$0xf] %v1650
        %1715 = vst [vmem:[%s374 + $0x70] sm:$0xf] %v1651
        %1716 = vst [vmem:[%s374 + $0x74] sm:$0xf] %v1652
        %1717 = vst [vmem:[%s374 + $0x78] sm:$0xf] %v1653
        %1718 = vst [vmem:[%s374 + $0x7c] sm:$0xf] %v1654
        %s1719 = smul.u32 32, %s28
        %p1720 = scmp.lt.s32.totalorder %s1719, 63
        %s1721 = scalar_select %p1720, %s1719, 63
        %p1722 = scmp.lt.s32.totalorder %s27, 0
        %s1723 = scalar_select %p1722, %s27, 0
        %s1724 = sadd.s32 %s1723, %s1721
        %s1725 = smul.addr %s1724, 4
        %s1726 = scalar_lea.vmem %s7, %s1725
        %s1727 = sand.u32 %s245, 1
        %s1728 = scalar_lea.sflag [#allocation3], %s1727
        %s1729 = sand.u32 %s245, 1
        %s1730 = smul.addr %s1729, 128
        %s1731 = scalar_lea.vmem [#allocation2], %s1730
        // Predicated region
        $region49: #{tpu_custom_call.1} parent=47 // pred_check
          %p1732 = pneg %p227
        $region50: #{tpu_custom_call.1} parent=47 // pred_check_branch
          %1734 = sbr.rel (%p1732) target = $region52
        $region51: #{tpu_custom_call.1} parent=47 // pred_region
          %s1735 = smul.u32 32, %s28
        $region52: #{tpu_custom_call.1} parent=47 // pred_fallthru
          _
        // Predicated region
        $region53: #{tpu_custom_call.1} parent=47 // pred_check
          %p1736 = pneg %p255
        $region54: #{tpu_custom_call.1} parent=47 // pred_check_branch
          %1738 = sbr.rel (%p1736) target = $region56
        $region55: #{tpu_custom_call.1} parent=47 // pred_region
          %s1739 = smul.u32 32, %s28
          %s1741 = ssub.s32 2048, 2048
          %1742 = vsyncadd %s1728, %s1741
          %s1743 = sadd.s32 %s27, %s1739
          %s1744 = smul.addr %s1743, 64
          %s1745 = scalar_lea.hbm %s8, %s1744
          %s1746 = sshll.u32 %s1731, 4
          %s1747 = int_to_ptr.vmem [resolvable:$true] %s1746
          %1752 = dma.vmem_to_hbm [thread:$0]  %s1747, 2048, %s1745, %s1728, 64, 64, 4
        $region56: #{tpu_custom_call.1} parent=47 // pred_fallthru
          _
      $region48: #{tpu_custom_call.1} parent=5 // pred_fallthru
        _
      %p1753 = scmp.le.s32.totalorder 2, %s18
      // Predicated region
      $region57: #{tpu_custom_call.1} parent=5 // pred_check
        %p1754 = pneg %p1753
      $region58: #{tpu_custom_call.1} parent=5 // pred_check_branch
        %1756 = sbr.rel (%p1754) target = $region60
      $region59: #{tpu_custom_call.1} parent=5 // pred_region
        %s1757 = ssub.s32 %s18, 2
        // Predicated region
        $region61: #{tpu_custom_call.1} parent=59 // pred_check
          %p1758 = pneg %p233
        $region62: #{tpu_custom_call.1} parent=59 // pred_check_branch
          %1760 = sbr.rel (%p1758) target = $region64
        $region63: #{tpu_custom_call.1} parent=59 // pred_region
          %s1761 = smul.u32 32, %s30
          %p1762 = scmp.lt.s32.totalorder %s1761, 63
          %s1763 = scalar_select %p1762, %s1761, 63
          %p1764 = scmp.lt.s32.totalorder %s29, 0
          %s1765 = scalar_select %p1764, %s29, 0
          %s1766 = sadd.s32 %s1765, %s1763
          %s1767 = smul.addr %s1766, 4
          %s1768 = scalar_lea.vmem %s7, %s1767
        $region64: #{tpu_custom_call.1} parent=59 // pred_fallthru
          _
        // Predicated region
        $region65: #{tpu_custom_call.1} parent=59 // pred_check
          %p1769 = pneg %p261
        $region66: #{tpu_custom_call.1} parent=59 // pred_check_branch
          %1771 = sbr.rel (%p1769) target = $region68
        $region67: #{tpu_custom_call.1} parent=59 // pred_region
          %s1772 = sand.u32 %s246, 1
          %s1773 = scalar_lea.sflag [#allocation3], %s1772
          %s1774 = sand.u32 %s246, 1
          %s1775 = smul.addr %s1774, 128
          %s1776 = scalar_lea.vmem [#allocation2], %s1775
          %1777 = dma.done %s1773, 2048
        $region68: #{tpu_custom_call.1} parent=59 // pred_fallthru
          _
      $region60: #{tpu_custom_call.1} parent=5 // pred_fallthru
        _
    $region6: #{tpu_custom_call.1} parent=1 // loop_footer
      %s22 = sadd.s32 1, %s18
    $region7: #{tpu_custom_call.1} parent=1 // loop_footer_branch
      %17 = sbr.rel target = $region3
    $region8: #{tpu_custom_call.1} parent=1 // loop_exit
      _
    %1778 = vsyncpa [#allocation3], 1
    %s1779 = scalar_lea.sflag [#allocation3], 1
    %1780 = vsyncpa %s1779, 1

</llo_original>
